<compile_context>
chip_gen: v7x
topology: tpu7x:2x2x1
jax: 0.10.0
libtpu: 0.0.40
codegen_flags: <defaults>
</compile_context>

<pallas_src>
import jax
import jax.numpy as jnp
from jax import lax
from jax.experimental import pallas as pl
from jax.experimental.pallas import tpu as pltpu

# ------------------------- problem sizes (small demo) -------------------------
T = 4          # task_batch_size
S = 8          # support examples per task
Q = 8          # query examples per task
D = 32         # feature dim
C = 8          # num classes

NUM_INNER_STEPS = 5
META_LR = 1e-3          # forward() inner updates use the (differentiable) meta Adam
INNER_LR = 1e-2         # only used by MAML.adapt (plain SGD), not by forward()
BETA1, BETA2, EPS = 0.9, 0.999, 1e-8

NEG_BIG = -1e30         # finite "-inf": masked exp underflows to exactly 0, no NaNs


# ------------------------------- Pallas kernel --------------------------------
def maml_fused_kernel(sx_ref, sxT_ref, qx_ref, w_ref, b_ref,
                      oh_s_ref, oh_q_ref, mask_s_ref, mask_q_ref, gsel_ref,
                      out_ref):
    """All T tasks at once: task-packed lane layout, register-resident Adam state."""
    sx = sx_ref[...]          # (T*S, D)    support features, tasks stacked on rows
    sxT = sxT_ref[...]        # (D, T*S)    pre-transposed support features
    qx = qx_ref[...]          # (T*Q, D)
    wf = w_ref[...]           # (D, T*C)    meta W pre-tiled along lanes per task
    bf = b_ref[...]           # (1, T*C)    meta b pre-tiled along lanes per task
    oh_s = oh_s_ref[...]      # (T*S, T*C)  block-diagonal packed one-hot labels
    oh_q = oh_q_ref[...]      # (T*Q, T*C)
    mask_s = mask_s_ref[...]  # (T*S, T*C)  additive mask: 0 on-block, NEG_BIG off
    mask_q = mask_q_ref[...]  # (T*Q, T*C)
    gsel = gsel_ref[...]      # (T*Q, T)    per-task row selector (f32 0/1)

    # Fresh differentiable-Adam state (higher's diffopt starts empty), carried
    # through the unrolled loop in registers — no VMEM scratch traffic.
    mw = jnp.zeros((D, T * C), jnp.float32)
    vw = jnp.zeros((D, T * C), jnp.float32)
    mb = jnp.zeros((1, T * C), jnp.float32)
    vb = jnp.zeros((1, T * C), jnp.float32)

    inv_s = 1.0 / S

    # ---- inner loop: NUM_INNER_STEPS differentiable Adam steps on support CE ----
    # Fully unrolled (fixed short trip count -> full LLO scheduler visibility).
    for t in range(1, NUM_INNER_STEPS + 1):
        logits = jnp.dot(sx, wf, preferred_element_type=jnp.float32) + bf + mask_s
        m = jnp.max(logits, axis=1, keepdims=True)
        e = jnp.exp(logits - m)                           # off-block -> exactly 0
        se = jnp.sum(e, axis=1, keepdims=True)
        p = e * (1.0 / se)                                # exact softmax (see review)
        # d(mean cross-entropy)/dlogits; identically zero off-block.
        g = (p - oh_s) * inv_s                                            # (T*S, T*C)
        # dW_t = sx_t^T @ g_t for every task at once (off-block zeros make the
        # cross-task contributions vanish exactly). No in-loop transpose.
        gw = jnp.dot(sxT, g, preferred_element_type=jnp.float32)          # (D, T*C)
        gb = jnp.sum(g, axis=0, keepdims=True)                            # (1, T*C)

        mw = BETA1 * mw + (1.0 - BETA1) * gw
        vw = BETA2 * vw + (1.0 - BETA2) * (gw * gw)
        mb = BETA1 * mb + (1.0 - BETA1) * gb
        vb = BETA2 * vb + (1.0 - BETA2) * (gb * gb)

        # Bias corrections are static python constants (folded at trace time).
        step_scale = META_LR / (1.0 - BETA1 ** t)     # lr / bc1
        inv_bc2 = 1.0 / (1.0 - BETA2 ** t)
        # Epsilon placement matches torch.optim.Adam: sqrt(v_hat) + eps, then the
        # reciprocal (EUP) replaces the VPU divide on the serial chain.
        wf = wf - (step_scale * mw) * pl.reciprocal(
            jnp.sqrt(vw * inv_bc2) + EPS, approx=True)
        bf = bf - (step_scale * mb) * pl.reciprocal(
            jnp.sqrt(vb * inv_bc2) + EPS, approx=True)

    # ---- query evaluation with the adapted (fast) weights ----
    ql = jnp.dot(qx, wf, preferred_element_type=jnp.float32) + bf + mask_q  # (T*Q, T*C)
    maxq = jnp.max(ql, axis=1, keepdims=True)
    lse = maxq + jnp.log(jnp.sum(jnp.exp(ql - maxq), axis=1, keepdims=True))
    true_logit = jnp.sum(ql * oh_q, axis=1, keepdims=True)
    row_loss = lse - true_logit                                             # (T*Q, 1)
    # accuracy: correct iff the true class attains the row max
    # (float ties are measure-zero; torch argmax first-index tie-break ignored)
    row_correct = jnp.sum(oh_q * (ql >= maxq).astype(jnp.float32),
                          axis=1, keepdims=True)                            # (T*Q, 1)

    # Per-task means via the precomputed group selector, reduced over rows.
    task_loss = jnp.sum(row_loss * gsel, axis=0, keepdims=True) * (1.0 / Q)    # (1, T)
    task_acc = jnp.sum(row_correct * gsel, axis=0, keepdims=True) * (1.0 / Q)  # (1, T)

    # Single packed store: row 0 = per-task losses, row 1 = per-task accuracies.
    out_ref[...] = jnp.concatenate([task_loss, task_acc], axis=0)


@jax.jit
def maml_forward_pallas(support_x, support_y, query_x, query_y, W, b):
    # ---- layout marshaling / constant precomputation done in XLA (free-ish) ----
    sx2 = support_x.reshape(T * S, D)
    sxT = sx2.T                                     # (D, T*S) — hoists the transpose
    qx2 = query_x.reshape(T * Q, D)
    w_tiled = jnp.tile(W, (1, T))                   # (D, T*C)
    b_tiled = jnp.tile(b, (1, T))                   # (1, T*C)

    col = jnp.arange(T * C)
    col_task = col // C
    col_cls = col % C

    def packed_labels(y, n):
        labels = y.reshape(T * n)                               # (T*n,)
        row_task = jnp.arange(T * n) // n
        block = row_task[:, None] == col_task[None, :]          # (T*n, T*C) bool
        onehot = (block & (col_cls[None, :] == labels[:, None])).astype(jnp.float32)
        mask = jnp.where(block, 0.0, NEG_BIG).astype(jnp.float32)
        return onehot, mask

    oh_s, mask_s = packed_labels(support_y, S)
    oh_q, mask_q = packed_labels(query_y, Q)
    gsel = (jnp.arange(T * Q)[:, None] // Q
            == jnp.arange(T)[None, :]).astype(jnp.float32)      # (T*Q, T)

    out = pl.pallas_call(
        maml_fused_kernel,
        out_shape=jax.ShapeDtypeStruct((2, T), jnp.float32),
        grid_spec=pltpu.PrefetchScalarGridSpec(
            num_scalar_prefetch=0,
            grid=(1,),                                   # single fused invocation
            in_specs=[
                pl.BlockSpec((T * S, D), lambda i: (0, 0)),       # sx
                pl.BlockSpec((D, T * S), lambda i: (0, 0)),       # sxT
                pl.BlockSpec((T * Q, D), lambda i: (0, 0)),       # qx
                pl.BlockSpec((D, T * C), lambda i: (0, 0)),       # W tiled
                pl.BlockSpec((1, T * C), lambda i: (0, 0)),       # b tiled
                pl.BlockSpec((T * S, T * C), lambda i: (0, 0)),   # onehot_s
                pl.BlockSpec((T * Q, T * C), lambda i: (0, 0)),   # onehot_q
                pl.BlockSpec((T * S, T * C), lambda i: (0, 0)),   # mask_s
                pl.BlockSpec((T * Q, T * C), lambda i: (0, 0)),   # mask_q
                pl.BlockSpec((T * Q, T), lambda i: (0, 0)),       # gsel
            ],
            out_specs=pl.BlockSpec((2, T), lambda i: (0, 0)),
        ),
        compiler_params=pltpu.CompilerParams(dimension_semantics=("arbitrary",)),
    )(sx2, sxT, qx2, w_tiled, b_tiled, oh_s, oh_q, mask_s, mask_q, gsel)

    task_losses = out[0]                 # (T,)
    task_accs = out[1]                   # (T,)
    meta_loss = jnp.mean(task_losses)    # sum over tasks / task_batch_size
    return meta_loss, task_losses, task_accs


# ------------------------- pure-JAX reference (checking) ----------------------
def maml_forward_ref(support_x, support_y, query_x, query_y, W, b):
    def one_task(sx, sy, qx, qy):
        wf, bf = W, b
        mw = jnp.zeros_like(W); vw = jnp.zeros_like(W)
        mb = jnp.zeros_like(b); vb = jnp.zeros_like(b)
        onehot_s = jax.nn.one_hot(sy[:, 0], C, dtype=jnp.float32)
        for t in range(1, NUM_INNER_STEPS + 1):
            logits = sx @ wf + bf
            p = jax.nn.softmax(logits, axis=1)
            g = (p - onehot_s) / S
            gw = sx.T @ g
            gb = jnp.sum(g, axis=0, keepdims=True)
            mw = BETA1 * mw + (1 - BETA1) * gw
            vw = BETA2 * vw + (1 - BETA2) * gw * gw
            mb = BETA1 * mb + (1 - BETA1) * gb
            vb = BETA2 * vb + (1 - BETA2) * gb * gb
            wf = wf - META_LR * (mw / (1 - BETA1 ** t)) / (jnp.sqrt(vw / (1 - BETA2 ** t)) + EPS)
            bf = bf - META_LR * (mb / (1 - BETA1 ** t)) / (jnp.sqrt(vb / (1 - BETA2 ** t)) + EPS)
        qlogits = qx @ wf + bf
        logp = jax.nn.log_softmax(qlogits, axis=1)
        loss = -jnp.mean(jnp.take_along_axis(logp, qy, axis=1))
        pred = jnp.argmax(qlogits, axis=1)
        acc = jnp.mean((pred == qy[:, 0]).astype(jnp.float32))
        return loss, acc

    losses, accs = jax.vmap(one_task)(support_x, support_y, query_x, query_y)
    return jnp.mean(losses), losses, accs


# ------------------------------------ main -------------------------------------
if __name__ == "__main__":
    key = jax.random.PRNGKey(0)
    k_sx, k_sy, k_qx, k_qy, k_w = jax.random.split(key, 5)

    support_x = jax.random.normal(k_sx, (T, S, D), dtype=jnp.float32)
    support_y = jax.random.randint(k_sy, (T, S, 1), 0, C, dtype=jnp.int32)
    query_x = jax.random.normal(k_qx, (T, Q, D), dtype=jnp.float32)
    query_y = jax.random.randint(k_qy, (T, Q, 1), 0, C, dtype=jnp.int32)

    # Deterministic parameter init for the (synthetic) inner model.
    W = 0.1 * jax.random.normal(k_w, (D, C), dtype=jnp.float32)
    b = jnp.zeros((1, C), dtype=jnp.float32)

    meta_loss, task_losses, task_accs = maml_forward_pallas(
        support_x, support_y, query_x, query_y, W, b)
    jax.block_until_ready((meta_loss, task_losses, task_accs))

    # Metrics dict mirroring MAML.forward's return value.
    meta_metrics = {
        "meta_loss": float(meta_loss),
        "mean_task_loss": float(jnp.mean(task_losses)),
        "mean_task_accuracy": float(jnp.mean(task_accs)),
    }

    # Verify against the pure-JAX reference. Only remaining approximation is the
    # EUP reciprocal of the Adam denominator (weight error bounded by ~META_LR*1e-3).
    ref_loss, ref_losses, ref_accs = maml_forward_ref(
        support_x, support_y, query_x, query_y, W, b)
    assert jnp.allclose(meta_loss, ref_loss, rtol=1e-3, atol=1e-3)
    assert jnp.allclose(task_losses, ref_losses, rtol=1e-3, atol=1e-3)
    assert jnp.allclose(task_accs, ref_accs, rtol=1e-3, atol=1e-3)

    # TODO(synk): torch argmax tie-breaking (first max index) is not reproduced;
    # accuracy uses "true class attains the max", identical for generic floats.
    print("KERNEL_OK")
</pallas_src>

<mosaic_0001>
module attributes {stable_mosaic.version = 11 : i64} {
  func.func @maml_fused_kernel(%arg0: i32, %arg1: memref<32x32xf32, #tpu.memory_space<vmem>>, %arg2: memref<32x32xf32, #tpu.memory_space<vmem>>, %arg3: memref<32x32xf32, #tpu.memory_space<vmem>>, %arg4: memref<32x32xf32, #tpu.memory_space<vmem>>, %arg5: memref<1x32xf32, #tpu.memory_space<vmem>>, %arg6: memref<32x32xf32, #tpu.memory_space<vmem>>, %arg7: memref<32x32xf32, #tpu.memory_space<vmem>>, %arg8: memref<32x32xf32, #tpu.memory_space<vmem>>, %arg9: memref<32x32xf32, #tpu.memory_space<vmem>>, %arg10: memref<32x4xf32, #tpu.memory_space<vmem>>, %arg11: memref<2x4xf32, #tpu.memory_space<vmem>>) attributes {dimension_semantics = [#tpu.dimension_semantics<arbitrary>], iteration_bounds = array<i64: 1>, scalar_prefetch = 0 : i64, scratch_operands = 0 : i64, tpu.core_type = #tpu.core_type<tc>, window_params = [{pipeline_mode = #tpu.pipeline_mode<synchronous>, transform_indices = @transform_0, window_bounds = array<i64: 32, 32>}, {pipeline_mode = #tpu.pipeline_mode<synchronous>, transform_indices = @transform_1, window_bounds = array<i64: 32, 32>}, {pipeline_mode = #tpu.pipeline_mode<synchronous>, transform_indices = @transform_2, window_bounds = array<i64: 32, 32>}, {pipeline_mode = #tpu.pipeline_mode<synchronous>, transform_indices = @transform_3, window_bounds = array<i64: 32, 32>}, {pipeline_mode = #tpu.pipeline_mode<synchronous>, transform_indices = @transform_4, window_bounds = array<i64: 1, 32>}, {pipeline_mode = #tpu.pipeline_mode<synchronous>, transform_indices = @transform_5, window_bounds = array<i64: 32, 32>}, {pipeline_mode = #tpu.pipeline_mode<synchronous>, transform_indices = @transform_6, window_bounds = array<i64: 32, 32>}, {pipeline_mode = #tpu.pipeline_mode<synchronous>, transform_indices = @transform_7, window_bounds = array<i64: 32, 32>}, {pipeline_mode = #tpu.pipeline_mode<synchronous>, transform_indices = @transform_8, window_bounds = array<i64: 32, 32>}, {pipeline_mode = #tpu.pipeline_mode<synchronous>, transform_indices = @transform_9, window_bounds = array<i64: 32, 4>}, {pipeline_mode = #tpu.pipeline_mode<synchronous>, transform_indices = @transform_10, window_bounds = array<i64: 2, 4>}]} {
    %c0 = arith.constant 0 : index
    %c0_0 = arith.constant 0 : index
    %0 = vector.load %arg1[%c0, %c0_0] : memref<32x32xf32, #tpu.memory_space<vmem>>, vector<32x32xf32>
    %c0_1 = arith.constant 0 : index
    %c0_2 = arith.constant 0 : index
    %1 = vector.load %arg2[%c0_1, %c0_2] : memref<32x32xf32, #tpu.memory_space<vmem>>, vector<32x32xf32>
    %c0_3 = arith.constant 0 : index
    %c0_4 = arith.constant 0 : index
    %2 = vector.load %arg3[%c0_3, %c0_4] : memref<32x32xf32, #tpu.memory_space<vmem>>, vector<32x32xf32>
    %c0_5 = arith.constant 0 : index
    %c0_6 = arith.constant 0 : index
    %3 = vector.load %arg4[%c0_5, %c0_6] : memref<32x32xf32, #tpu.memory_space<vmem>>, vector<32x32xf32>
    %c0_7 = arith.constant 0 : index
    %c0_8 = arith.constant 0 : index
    %4 = vector.load %arg5[%c0_7, %c0_8] : memref<1x32xf32, #tpu.memory_space<vmem>>, vector<1x32xf32>
    %c0_9 = arith.constant 0 : index
    %c0_10 = arith.constant 0 : index
    %5 = vector.load %arg6[%c0_9, %c0_10] : memref<32x32xf32, #tpu.memory_space<vmem>>, vector<32x32xf32>
    %c0_11 = arith.constant 0 : index
    %c0_12 = arith.constant 0 : index
    %6 = vector.load %arg7[%c0_11, %c0_12] : memref<32x32xf32, #tpu.memory_space<vmem>>, vector<32x32xf32>
    %c0_13 = arith.constant 0 : index
    %c0_14 = arith.constant 0 : index
    %7 = vector.load %arg8[%c0_13, %c0_14] : memref<32x32xf32, #tpu.memory_space<vmem>>, vector<32x32xf32>
    %c0_15 = arith.constant 0 : index
    %c0_16 = arith.constant 0 : index
    %8 = vector.load %arg9[%c0_15, %c0_16] : memref<32x32xf32, #tpu.memory_space<vmem>>, vector<32x32xf32>
    %c0_17 = arith.constant 0 : index
    %c0_18 = arith.constant 0 : index
    %9 = vector.load %arg10[%c0_17, %c0_18] : memref<32x4xf32, #tpu.memory_space<vmem>>, vector<32x4xf32>
    %cst = arith.constant 0.000000e+00 : f32
    %10 = vector.broadcast %cst : f32 to vector<32x32xf32>
    %cst_19 = arith.constant 0.000000e+00 : f32
    %11 = vector.broadcast %cst_19 : f32 to vector<32x32xf32>
    %cst_20 = arith.constant 0.000000e+00 : f32
    %12 = vector.broadcast %cst_20 : f32 to vector<1x32xf32>
    %cst_21 = arith.constant 0.000000e+00 : f32
    %13 = vector.broadcast %cst_21 : f32 to vector<1x32xf32>
    %cst_22 = arith.constant dense<0.000000e+00> : vector<32x32xf32>
    %14 = tpu.matmul %0, %3, %cst_22 {dimension_numbers = #tpu.dot_dimension_numbers<[1], [0], [0], [1], [0, 0, 1, 1], [], []>} : vector<32x32xf32>, vector<32x32xf32>, vector<32x32xf32> -> vector<32x32xf32>
    %15 = vector.broadcast %4 : vector<1x32xf32> to vector<32x32xf32>
    %16 = arith.addf %14, %15 : vector<32x32xf32>
    %17 = arith.addf %16, %7 : vector<32x32xf32>
    %cst_23 = arith.constant dense<0xFF800000> : vector<32xf32>
    %18 = vector.multi_reduction <maximumf>, %17, %cst_23 [1] : vector<32x32xf32> to vector<32xf32>
    %19 = vector.shape_cast %18 : vector<32xf32> to vector<32x1xf32>
    %20 = vector.broadcast %19 : vector<32x1xf32> to vector<32x32xf32>
    %21 = arith.subf %17, %20 : vector<32x32xf32>
    %22 = math.exp %21 : vector<32x32xf32>
    %cst_24 = arith.constant dense<0.000000e+00> : vector<32xf32>
    %23 = vector.multi_reduction <add>, %22, %cst_24 [1] : vector<32x32xf32> to vector<32xf32>
    %24 = vector.shape_cast %23 : vector<32xf32> to vector<32x1xf32>
    %cst_25 = arith.constant 1.000000e+00 : f32
    %25 = vector.broadcast %cst_25 : f32 to vector<32x1xf32>
    %26 = arith.divf %25, %24 : vector<32x1xf32>
    %27 = vector.broadcast %26 : vector<32x1xf32> to vector<32x32xf32>
    %28 = arith.mulf %22, %27 : vector<32x32xf32>
    %29 = arith.subf %28, %5 : vector<32x32xf32>
    %cst_26 = arith.constant 1.250000e-01 : f32
    %30 = vector.broadcast %cst_26 : f32 to vector<32x32xf32>
    %31 = arith.mulf %29, %30 : vector<32x32xf32>
    %cst_27 = arith.constant dense<0.000000e+00> : vector<32x32xf32>
    %32 = tpu.matmul %1, %31, %cst_27 {dimension_numbers = #tpu.dot_dimension_numbers<[1], [0], [0], [1], [0, 0, 1, 1], [], []>} : vector<32x32xf32>, vector<32x32xf32>, vector<32x32xf32> -> vector<32x32xf32>
    %cst_28 = arith.constant dense<0.000000e+00> : vector<32xf32>
    %33 = vector.multi_reduction <add>, %31, %cst_28 [0] : vector<32x32xf32> to vector<32xf32>
    %34 = vector.shape_cast %33 : vector<32xf32> to vector<1x32xf32>
    %cst_29 = arith.constant 0.899999976 : f32
    %35 = vector.broadcast %cst_29 : f32 to vector<32x32xf32>
    %36 = arith.mulf %35, %10 : vector<32x32xf32>
    %cst_30 = arith.constant 1.000000e-01 : f32
    %37 = vector.broadcast %cst_30 : f32 to vector<32x32xf32>
    %38 = arith.mulf %37, %32 : vector<32x32xf32>
    %39 = arith.addf %36, %38 : vector<32x32xf32>
    %cst_31 = arith.constant 9.990000e-01 : f32
    %40 = vector.broadcast %cst_31 : f32 to vector<32x32xf32>
    %41 = arith.mulf %40, %11 : vector<32x32xf32>
    %42 = arith.mulf %32, %32 : vector<32x32xf32>
    %cst_32 = arith.constant 1.000000e-03 : f32
    %43 = vector.broadcast %cst_32 : f32 to vector<32x32xf32>
    %44 = arith.mulf %43, %42 : vector<32x32xf32>
    %45 = arith.addf %41, %44 : vector<32x32xf32>
    %cst_33 = arith.constant 0.899999976 : f32
    %46 = vector.broadcast %cst_33 : f32 to vector<1x32xf32>
    %47 = arith.mulf %46, %12 : vector<1x32xf32>
    %cst_34 = arith.constant 1.000000e-01 : f32
    %48 = vector.broadcast %cst_34 : f32 to vector<1x32xf32>
    %49 = arith.mulf %48, %34 : vector<1x32xf32>
    %50 = arith.addf %47, %49 : vector<1x32xf32>
    %cst_35 = arith.constant 9.990000e-01 : f32
    %51 = vector.broadcast %cst_35 : f32 to vector<1x32xf32>
    %52 = arith.mulf %51, %13 : vector<1x32xf32>
    %53 = arith.mulf %34, %34 : vector<1x32xf32>
    %cst_36 = arith.constant 1.000000e-03 : f32
    %54 = vector.broadcast %cst_36 : f32 to vector<1x32xf32>
    %55 = arith.mulf %54, %53 : vector<1x32xf32>
    %56 = arith.addf %52, %55 : vector<1x32xf32>
    %cst_37 = arith.constant 0.00999999977 : f32
    %57 = vector.broadcast %cst_37 : f32 to vector<32x32xf32>
    %58 = arith.mulf %57, %39 : vector<32x32xf32>
    %cst_38 = arith.constant 1.000000e+03 : f32
    %59 = vector.broadcast %cst_38 : f32 to vector<32x32xf32>
    %60 = arith.mulf %45, %59 : vector<32x32xf32>
    %61 = math.sqrt %60 : vector<32x32xf32>
    %cst_39 = arith.constant 9.99999993E-9 : f32
    %62 = vector.broadcast %cst_39 : f32 to vector<32x32xf32>
    %63 = arith.addf %61, %62 : vector<32x32xf32>
    %64 = tpu.reciprocal %63 {approx = true} : vector<32x32xf32> -> vector<32x32xf32>
    %65 = arith.mulf %58, %64 : vector<32x32xf32>
    %66 = arith.subf %3, %65 : vector<32x32xf32>
    %cst_40 = arith.constant 0.00999999977 : f32
    %67 = vector.broadcast %cst_40 : f32 to vector<1x32xf32>
    %68 = arith.mulf %67, %50 : vector<1x32xf32>
    %cst_41 = arith.constant 1.000000e+03 : f32
    %69 = vector.broadcast %cst_41 : f32 to vector<1x32xf32>
    %70 = arith.mulf %56, %69 : vector<1x32xf32>
    %71 = math.sqrt %70 : vector<1x32xf32>
    %cst_42 = arith.constant 9.99999993E-9 : f32
    %72 = vector.broadcast %cst_42 : f32 to vector<1x32xf32>
    %73 = arith.addf %71, %72 : vector<1x32xf32>
    %74 = tpu.reciprocal %73 {approx = true} : vector<1x32xf32> -> vector<1x32xf32>
    %75 = arith.mulf %68, %74 : vector<1x32xf32>
    %76 = arith.subf %4, %75 : vector<1x32xf32>
    %cst_43 = arith.constant dense<0.000000e+00> : vector<32x32xf32>
    %77 = tpu.matmul %0, %66, %cst_43 {dimension_numbers = #tpu.dot_dimension_numbers<[1], [0], [0], [1], [0, 0, 1, 1], [], []>} : vector<32x32xf32>, vector<32x32xf32>, vector<32x32xf32> -> vector<32x32xf32>
    %78 = vector.broadcast %76 : vector<1x32xf32> to vector<32x32xf32>
    %79 = arith.addf %77, %78 : vector<32x32xf32>
    %80 = arith.addf %79, %7 : vector<32x32xf32>
    %cst_44 = arith.constant dense<0xFF800000> : vector<32xf32>
    %81 = vector.multi_reduction <maximumf>, %80, %cst_44 [1] : vector<32x32xf32> to vector<32xf32>
    %82 = vector.shape_cast %81 : vector<32xf32> to vector<32x1xf32>
    %83 = vector.broadcast %82 : vector<32x1xf32> to vector<32x32xf32>
    %84 = arith.subf %80, %83 : vector<32x32xf32>
    %85 = math.exp %84 : vector<32x32xf32>
    %cst_45 = arith.constant dense<0.000000e+00> : vector<32xf32>
    %86 = vector.multi_reduction <add>, %85, %cst_45 [1] : vector<32x32xf32> to vector<32xf32>
    %87 = vector.shape_cast %86 : vector<32xf32> to vector<32x1xf32>
    %cst_46 = arith.constant 1.000000e+00 : f32
    %88 = vector.broadcast %cst_46 : f32 to vector<32x1xf32>
    %89 = arith.divf %88, %87 : vector<32x1xf32>
    %90 = vector.broadcast %89 : vector<32x1xf32> to vector<32x32xf32>
    %91 = arith.mulf %85, %90 : vector<32x32xf32>
    %92 = arith.subf %91, %5 : vector<32x32xf32>
    %cst_47 = arith.constant 1.250000e-01 : f32
    %93 = vector.broadcast %cst_47 : f32 to vector<32x32xf32>
    %94 = arith.mulf %92, %93 : vector<32x32xf32>
    %cst_48 = arith.constant dense<0.000000e+00> : vector<32x32xf32>
    %95 = tpu.matmul %1, %94, %cst_48 {dimension_numbers = #tpu.dot_dimension_numbers<[1], [0], [0], [1], [0, 0, 1, 1], [], []>} : vector<32x32xf32>, vector<32x32xf32>, vector<32x32xf32> -> vector<32x32xf32>
    %cst_49 = arith.constant dense<0.000000e+00> : vector<32xf32>
    %96 = vector.multi_reduction <add>, %94, %cst_49 [0] : vector<32x32xf32> to vector<32xf32>
    %97 = vector.shape_cast %96 : vector<32xf32> to vector<1x32xf32>
    %cst_50 = arith.constant 0.899999976 : f32
    %98 = vector.broadcast %cst_50 : f32 to vector<32x32xf32>
    %99 = arith.mulf %98, %39 : vector<32x32xf32>
    %cst_51 = arith.constant 1.000000e-01 : f32
    %100 = vector.broadcast %cst_51 : f32 to vector<32x32xf32>
    %101 = arith.mulf %100, %95 : vector<32x32xf32>
    %102 = arith.addf %99, %101 : vector<32x32xf32>
    %cst_52 = arith.constant 9.990000e-01 : f32
    %103 = vector.broadcast %cst_52 : f32 to vector<32x32xf32>
    %104 = arith.mulf %103, %45 : vector<32x32xf32>
    %105 = arith.mulf %95, %95 : vector<32x32xf32>
    %cst_53 = arith.constant 1.000000e-03 : f32
    %106 = vector.broadcast %cst_53 : f32 to vector<32x32xf32>
    %107 = arith.mulf %106, %105 : vector<32x32xf32>
    %108 = arith.addf %104, %107 : vector<32x32xf32>
    %cst_54 = arith.constant 0.899999976 : f32
    %109 = vector.broadcast %cst_54 : f32 to vector<1x32xf32>
    %110 = arith.mulf %109, %50 : vector<1x32xf32>
    %cst_55 = arith.constant 1.000000e-01 : f32
    %111 = vector.broadcast %cst_55 : f32 to vector<1x32xf32>
    %112 = arith.mulf %111, %97 : vector<1x32xf32>
    %113 = arith.addf %110, %112 : vector<1x32xf32>
    %cst_56 = arith.constant 9.990000e-01 : f32
    %114 = vector.broadcast %cst_56 : f32 to vector<1x32xf32>
    %115 = arith.mulf %114, %56 : vector<1x32xf32>
    %116 = arith.mulf %97, %97 : vector<1x32xf32>
    %cst_57 = arith.constant 1.000000e-03 : f32
    %117 = vector.broadcast %cst_57 : f32 to vector<1x32xf32>
    %118 = arith.mulf %117, %116 : vector<1x32xf32>
    %119 = arith.addf %115, %118 : vector<1x32xf32>
    %cst_58 = arith.constant 0.00526315812 : f32
    %120 = vector.broadcast %cst_58 : f32 to vector<32x32xf32>
    %121 = arith.mulf %120, %102 : vector<32x32xf32>
    %cst_59 = arith.constant 500.250122 : f32
    %122 = vector.broadcast %cst_59 : f32 to vector<32x32xf32>
    %123 = arith.mulf %108, %122 : vector<32x32xf32>
    %124 = math.sqrt %123 : vector<32x32xf32>
    %cst_60 = arith.constant 9.99999993E-9 : f32
    %125 = vector.broadcast %cst_60 : f32 to vector<32x32xf32>
    %126 = arith.addf %124, %125 : vector<32x32xf32>
    %127 = tpu.reciprocal %126 {approx = true} : vector<32x32xf32> -> vector<32x32xf32>
    %128 = arith.mulf %121, %127 : vector<32x32xf32>
    %129 = arith.subf %66, %128 : vector<32x32xf32>
    %cst_61 = arith.constant 0.00526315812 : f32
    %130 = vector.broadcast %cst_61 : f32 to vector<1x32xf32>
    %131 = arith.mulf %130, %113 : vector<1x32xf32>
    %cst_62 = arith.constant 500.250122 : f32
    %132 = vector.broadcast %cst_62 : f32 to vector<1x32xf32>
    %133 = arith.mulf %119, %132 : vector<1x32xf32>
    %134 = math.sqrt %133 : vector<1x32xf32>
    %cst_63 = arith.constant 9.99999993E-9 : f32
    %135 = vector.broadcast %cst_63 : f32 to vector<1x32xf32>
    %136 = arith.addf %134, %135 : vector<1x32xf32>
    %137 = tpu.reciprocal %136 {approx = true} : vector<1x32xf32> -> vector<1x32xf32>
    %138 = arith.mulf %131, %137 : vector<1x32xf32>
    %139 = arith.subf %76, %138 : vector<1x32xf32>
    %cst_64 = arith.constant dense<0.000000e+00> : vector<32x32xf32>
    %140 = tpu.matmul %0, %129, %cst_64 {dimension_numbers = #tpu.dot_dimension_numbers<[1], [0], [0], [1], [0, 0, 1, 1], [], []>} : vector<32x32xf32>, vector<32x32xf32>, vector<32x32xf32> -> vector<32x32xf32>
    %141 = vector.broadcast %139 : vector<1x32xf32> to vector<32x32xf32>
    %142 = arith.addf %140, %141 : vector<32x32xf32>
    %143 = arith.addf %142, %7 : vector<32x32xf32>
    %cst_65 = arith.constant dense<0xFF800000> : vector<32xf32>
    %144 = vector.multi_reduction <maximumf>, %143, %cst_65 [1] : vector<32x32xf32> to vector<32xf32>
    %145 = vector.shape_cast %144 : vector<32xf32> to vector<32x1xf32>
    %146 = vector.broadcast %145 : vector<32x1xf32> to vector<32x32xf32>
    %147 = arith.subf %143, %146 : vector<32x32xf32>
    %148 = math.exp %147 : vector<32x32xf32>
    %cst_66 = arith.constant dense<0.000000e+00> : vector<32xf32>
    %149 = vector.multi_reduction <add>, %148, %cst_66 [1] : vector<32x32xf32> to vector<32xf32>
    %150 = vector.shape_cast %149 : vector<32xf32> to vector<32x1xf32>
    %cst_67 = arith.constant 1.000000e+00 : f32
    %151 = vector.broadcast %cst_67 : f32 to vector<32x1xf32>
    %152 = arith.divf %151, %150 : vector<32x1xf32>
    %153 = vector.broadcast %152 : vector<32x1xf32> to vector<32x32xf32>
    %154 = arith.mulf %148, %153 : vector<32x32xf32>
    %155 = arith.subf %154, %5 : vector<32x32xf32>
    %cst_68 = arith.constant 1.250000e-01 : f32
    %156 = vector.broadcast %cst_68 : f32 to vector<32x32xf32>
    %157 = arith.mulf %155, %156 : vector<32x32xf32>
    %cst_69 = arith.constant dense<0.000000e+00> : vector<32x32xf32>
    %158 = tpu.matmul %1, %157, %cst_69 {dimension_numbers = #tpu.dot_dimension_numbers<[1], [0], [0], [1], [0, 0, 1, 1], [], []>} : vector<32x32xf32>, vector<32x32xf32>, vector<32x32xf32> -> vector<32x32xf32>
    %cst_70 = arith.constant dense<0.000000e+00> : vector<32xf32>
    %159 = vector.multi_reduction <add>, %157, %cst_70 [0] : vector<32x32xf32> to vector<32xf32>
    %160 = vector.shape_cast %159 : vector<32xf32> to vector<1x32xf32>
    %cst_71 = arith.constant 0.899999976 : f32
    %161 = vector.broadcast %cst_71 : f32 to vector<32x32xf32>
    %162 = arith.mulf %161, %102 : vector<32x32xf32>
    %cst_72 = arith.constant 1.000000e-01 : f32
    %163 = vector.broadcast %cst_72 : f32 to vector<32x32xf32>
    %164 = arith.mulf %163, %158 : vector<32x32xf32>
    %165 = arith.addf %162, %164 : vector<32x32xf32>
    %cst_73 = arith.constant 9.990000e-01 : f32
    %166 = vector.broadcast %cst_73 : f32 to vector<32x32xf32>
    %167 = arith.mulf %166, %108 : vector<32x32xf32>
    %168 = arith.mulf %158, %158 : vector<32x32xf32>
    %cst_74 = arith.constant 1.000000e-03 : f32
    %169 = vector.broadcast %cst_74 : f32 to vector<32x32xf32>
    %170 = arith.mulf %169, %168 : vector<32x32xf32>
    %171 = arith.addf %167, %170 : vector<32x32xf32>
    %cst_75 = arith.constant 0.899999976 : f32
    %172 = vector.broadcast %cst_75 : f32 to vector<1x32xf32>
    %173 = arith.mulf %172, %113 : vector<1x32xf32>
    %cst_76 = arith.constant 1.000000e-01 : f32
    %174 = vector.broadcast %cst_76 : f32 to vector<1x32xf32>
    %175 = arith.mulf %174, %160 : vector<1x32xf32>
    %176 = arith.addf %173, %175 : vector<1x32xf32>
    %cst_77 = arith.constant 9.990000e-01 : f32
    %177 = vector.broadcast %cst_77 : f32 to vector<1x32xf32>
    %178 = arith.mulf %177, %119 : vector<1x32xf32>
    %179 = arith.mulf %160, %160 : vector<1x32xf32>
    %cst_78 = arith.constant 1.000000e-03 : f32
    %180 = vector.broadcast %cst_78 : f32 to vector<1x32xf32>
    %181 = arith.mulf %180, %179 : vector<1x32xf32>
    %182 = arith.addf %178, %181 : vector<1x32xf32>
    %cst_79 = arith.constant 0.00369003695 : f32
    %183 = vector.broadcast %cst_79 : f32 to vector<32x32xf32>
    %184 = arith.mulf %183, %165 : vector<32x32xf32>
    %cst_80 = arith.constant 333.666901 : f32
    %185 = vector.broadcast %cst_80 : f32 to vector<32x32xf32>
    %186 = arith.mulf %171, %185 : vector<32x32xf32>
    %187 = math.sqrt %186 : vector<32x32xf32>
    %cst_81 = arith.constant 9.99999993E-9 : f32
    %188 = vector.broadcast %cst_81 : f32 to vector<32x32xf32>
    %189 = arith.addf %187, %188 : vector<32x32xf32>
    %190 = tpu.reciprocal %189 {approx = true} : vector<32x32xf32> -> vector<32x32xf32>
    %191 = arith.mulf %184, %190 : vector<32x32xf32>
    %192 = arith.subf %129, %191 : vector<32x32xf32>
    %cst_82 = arith.constant 0.00369003695 : f32
    %193 = vector.broadcast %cst_82 : f32 to vector<1x32xf32>
    %194 = arith.mulf %193, %176 : vector<1x32xf32>
    %cst_83 = arith.constant 333.666901 : f32
    %195 = vector.broadcast %cst_83 : f32 to vector<1x32xf32>
    %196 = arith.mulf %182, %195 : vector<1x32xf32>
    %197 = math.sqrt %196 : vector<1x32xf32>
    %cst_84 = arith.constant 9.99999993E-9 : f32
    %198 = vector.broadcast %cst_84 : f32 to vector<1x32xf32>
    %199 = arith.addf %197, %198 : vector<1x32xf32>
    %200 = tpu.reciprocal %199 {approx = true} : vector<1x32xf32> -> vector<1x32xf32>
    %201 = arith.mulf %194, %200 : vector<1x32xf32>
    %202 = arith.subf %139, %201 : vector<1x32xf32>
    %cst_85 = arith.constant dense<0.000000e+00> : vector<32x32xf32>
    %203 = tpu.matmul %0, %192, %cst_85 {dimension_numbers = #tpu.dot_dimension_numbers<[1], [0], [0], [1], [0, 0, 1, 1], [], []>} : vector<32x32xf32>, vector<32x32xf32>, vector<32x32xf32> -> vector<32x32xf32>
    %204 = vector.broadcast %202 : vector<1x32xf32> to vector<32x32xf32>
    %205 = arith.addf %203, %204 : vector<32x32xf32>
    %206 = arith.addf %205, %7 : vector<32x32xf32>
    %cst_86 = arith.constant dense<0xFF800000> : vector<32xf32>
    %207 = vector.multi_reduction <maximumf>, %206, %cst_86 [1] : vector<32x32xf32> to vector<32xf32>
    %208 = vector.shape_cast %207 : vector<32xf32> to vector<32x1xf32>
    %209 = vector.broadcast %208 : vector<32x1xf32> to vector<32x32xf32>
    %210 = arith.subf %206, %209 : vector<32x32xf32>
    %211 = math.exp %210 : vector<32x32xf32>
    %cst_87 = arith.constant dense<0.000000e+00> : vector<32xf32>
    %212 = vector.multi_reduction <add>, %211, %cst_87 [1] : vector<32x32xf32> to vector<32xf32>
    %213 = vector.shape_cast %212 : vector<32xf32> to vector<32x1xf32>
    %cst_88 = arith.constant 1.000000e+00 : f32
    %214 = vector.broadcast %cst_88 : f32 to vector<32x1xf32>
    %215 = arith.divf %214, %213 : vector<32x1xf32>
    %216 = vector.broadcast %215 : vector<32x1xf32> to vector<32x32xf32>
    %217 = arith.mulf %211, %216 : vector<32x32xf32>
    %218 = arith.subf %217, %5 : vector<32x32xf32>
    %cst_89 = arith.constant 1.250000e-01 : f32
    %219 = vector.broadcast %cst_89 : f32 to vector<32x32xf32>
    %220 = arith.mulf %218, %219 : vector<32x32xf32>
    %cst_90 = arith.constant dense<0.000000e+00> : vector<32x32xf32>
    %221 = tpu.matmul %1, %220, %cst_90 {dimension_numbers = #tpu.dot_dimension_numbers<[1], [0], [0], [1], [0, 0, 1, 1], [], []>} : vector<32x32xf32>, vector<32x32xf32>, vector<32x32xf32> -> vector<32x32xf32>
    %cst_91 = arith.constant dense<0.000000e+00> : vector<32xf32>
    %222 = vector.multi_reduction <add>, %220, %cst_91 [0] : vector<32x32xf32> to vector<32xf32>
    %223 = vector.shape_cast %222 : vector<32xf32> to vector<1x32xf32>
    %cst_92 = arith.constant 0.899999976 : f32
    %224 = vector.broadcast %cst_92 : f32 to vector<32x32xf32>
    %225 = arith.mulf %224, %165 : vector<32x32xf32>
    %cst_93 = arith.constant 1.000000e-01 : f32
    %226 = vector.broadcast %cst_93 : f32 to vector<32x32xf32>
    %227 = arith.mulf %226, %221 : vector<32x32xf32>
    %228 = arith.addf %225, %227 : vector<32x32xf32>
    %cst_94 = arith.constant 9.990000e-01 : f32
    %229 = vector.broadcast %cst_94 : f32 to vector<32x32xf32>
    %230 = arith.mulf %229, %171 : vector<32x32xf32>
    %231 = arith.mulf %221, %221 : vector<32x32xf32>
    %cst_95 = arith.constant 1.000000e-03 : f32
    %232 = vector.broadcast %cst_95 : f32 to vector<32x32xf32>
    %233 = arith.mulf %232, %231 : vector<32x32xf32>
    %234 = arith.addf %230, %233 : vector<32x32xf32>
    %cst_96 = arith.constant 0.899999976 : f32
    %235 = vector.broadcast %cst_96 : f32 to vector<1x32xf32>
    %236 = arith.mulf %235, %176 : vector<1x32xf32>
    %cst_97 = arith.constant 1.000000e-01 : f32
    %237 = vector.broadcast %cst_97 : f32 to vector<1x32xf32>
    %238 = arith.mulf %237, %223 : vector<1x32xf32>
    %239 = arith.addf %236, %238 : vector<1x32xf32>
    %cst_98 = arith.constant 9.990000e-01 : f32
    %240 = vector.broadcast %cst_98 : f32 to vector<1x32xf32>
    %241 = arith.mulf %240, %182 : vector<1x32xf32>
    %242 = arith.mulf %223, %223 : vector<1x32xf32>
    %cst_99 = arith.constant 1.000000e-03 : f32
    %243 = vector.broadcast %cst_99 : f32 to vector<1x32xf32>
    %244 = arith.mulf %243, %242 : vector<1x32xf32>
    %245 = arith.addf %241, %244 : vector<1x32xf32>
    %cst_100 = arith.constant 0.00290782214 : f32
    %246 = vector.broadcast %cst_100 : f32 to vector<32x32xf32>
    %247 = arith.mulf %246, %228 : vector<32x32xf32>
    %cst_101 = arith.constant 250.375305 : f32
    %248 = vector.broadcast %cst_101 : f32 to vector<32x32xf32>
    %249 = arith.mulf %234, %248 : vector<32x32xf32>
    %250 = math.sqrt %249 : vector<32x32xf32>
    %cst_102 = arith.constant 9.99999993E-9 : f32
    %251 = vector.broadcast %cst_102 : f32 to vector<32x32xf32>
    %252 = arith.addf %250, %251 : vector<32x32xf32>
    %253 = tpu.reciprocal %252 {approx = true} : vector<32x32xf32> -> vector<32x32xf32>
    %254 = arith.mulf %247, %253 : vector<32x32xf32>
    %255 = arith.subf %192, %254 : vector<32x32xf32>
    %cst_103 = arith.constant 0.00290782214 : f32
    %256 = vector.broadcast %cst_103 : f32 to vector<1x32xf32>
    %257 = arith.mulf %256, %239 : vector<1x32xf32>
    %cst_104 = arith.constant 250.375305 : f32
    %258 = vector.broadcast %cst_104 : f32 to vector<1x32xf32>
    %259 = arith.mulf %245, %258 : vector<1x32xf32>
    %260 = math.sqrt %259 : vector<1x32xf32>
    %cst_105 = arith.constant 9.99999993E-9 : f32
    %261 = vector.broadcast %cst_105 : f32 to vector<1x32xf32>
    %262 = arith.addf %260, %261 : vector<1x32xf32>
    %263 = tpu.reciprocal %262 {approx = true} : vector<1x32xf32> -> vector<1x32xf32>
    %264 = arith.mulf %257, %263 : vector<1x32xf32>
    %265 = arith.subf %202, %264 : vector<1x32xf32>
    %cst_106 = arith.constant dense<0.000000e+00> : vector<32x32xf32>
    %266 = tpu.matmul %0, %255, %cst_106 {dimension_numbers = #tpu.dot_dimension_numbers<[1], [0], [0], [1], [0, 0, 1, 1], [], []>} : vector<32x32xf32>, vector<32x32xf32>, vector<32x32xf32> -> vector<32x32xf32>
    %267 = vector.broadcast %265 : vector<1x32xf32> to vector<32x32xf32>
    %268 = arith.addf %266, %267 : vector<32x32xf32>
    %269 = arith.addf %268, %7 : vector<32x32xf32>
    %cst_107 = arith.constant dense<0xFF800000> : vector<32xf32>
    %270 = vector.multi_reduction <maximumf>, %269, %cst_107 [1] : vector<32x32xf32> to vector<32xf32>
    %271 = vector.shape_cast %270 : vector<32xf32> to vector<32x1xf32>
    %272 = vector.broadcast %271 : vector<32x1xf32> to vector<32x32xf32>
    %273 = arith.subf %269, %272 : vector<32x32xf32>
    %274 = math.exp %273 : vector<32x32xf32>
    %cst_108 = arith.constant dense<0.000000e+00> : vector<32xf32>
    %275 = vector.multi_reduction <add>, %274, %cst_108 [1] : vector<32x32xf32> to vector<32xf32>
    %276 = vector.shape_cast %275 : vector<32xf32> to vector<32x1xf32>
    %cst_109 = arith.constant 1.000000e+00 : f32
    %277 = vector.broadcast %cst_109 : f32 to vector<32x1xf32>
    %278 = arith.divf %277, %276 : vector<32x1xf32>
    %279 = vector.broadcast %278 : vector<32x1xf32> to vector<32x32xf32>
    %280 = arith.mulf %274, %279 : vector<32x32xf32>
    %281 = arith.subf %280, %5 : vector<32x32xf32>
    %cst_110 = arith.constant 1.250000e-01 : f32
    %282 = vector.broadcast %cst_110 : f32 to vector<32x32xf32>
    %283 = arith.mulf %281, %282 : vector<32x32xf32>
    %cst_111 = arith.constant dense<0.000000e+00> : vector<32x32xf32>
    %284 = tpu.matmul %1, %283, %cst_111 {dimension_numbers = #tpu.dot_dimension_numbers<[1], [0], [0], [1], [0, 0, 1, 1], [], []>} : vector<32x32xf32>, vector<32x32xf32>, vector<32x32xf32> -> vector<32x32xf32>
    %cst_112 = arith.constant dense<0.000000e+00> : vector<32xf32>
    %285 = vector.multi_reduction <add>, %283, %cst_112 [0] : vector<32x32xf32> to vector<32xf32>
    %286 = vector.shape_cast %285 : vector<32xf32> to vector<1x32xf32>
    %cst_113 = arith.constant 0.899999976 : f32
    %287 = vector.broadcast %cst_113 : f32 to vector<32x32xf32>
    %288 = arith.mulf %287, %228 : vector<32x32xf32>
    %cst_114 = arith.constant 1.000000e-01 : f32
    %289 = vector.broadcast %cst_114 : f32 to vector<32x32xf32>
    %290 = arith.mulf %289, %284 : vector<32x32xf32>
    %291 = arith.addf %288, %290 : vector<32x32xf32>
    %cst_115 = arith.constant 9.990000e-01 : f32
    %292 = vector.broadcast %cst_115 : f32 to vector<32x32xf32>
    %293 = arith.mulf %292, %234 : vector<32x32xf32>
    %294 = arith.mulf %284, %284 : vector<32x32xf32>
    %cst_116 = arith.constant 1.000000e-03 : f32
    %295 = vector.broadcast %cst_116 : f32 to vector<32x32xf32>
    %296 = arith.mulf %295, %294 : vector<32x32xf32>
    %297 = arith.addf %293, %296 : vector<32x32xf32>
    %cst_117 = arith.constant 0.899999976 : f32
    %298 = vector.broadcast %cst_117 : f32 to vector<1x32xf32>
    %299 = arith.mulf %298, %239 : vector<1x32xf32>
    %cst_118 = arith.constant 1.000000e-01 : f32
    %300 = vector.broadcast %cst_118 : f32 to vector<1x32xf32>
    %301 = arith.mulf %300, %286 : vector<1x32xf32>
    %302 = arith.addf %299, %301 : vector<1x32xf32>
    %cst_119 = arith.constant 9.990000e-01 : f32
    %303 = vector.broadcast %cst_119 : f32 to vector<1x32xf32>
    %304 = arith.mulf %303, %245 : vector<1x32xf32>
    %305 = arith.mulf %286, %286 : vector<1x32xf32>
    %cst_120 = arith.constant 1.000000e-03 : f32
    %306 = vector.broadcast %cst_120 : f32 to vector<1x32xf32>
    %307 = arith.mulf %306, %305 : vector<1x32xf32>
    %308 = arith.addf %304, %307 : vector<1x32xf32>
    %cst_121 = arith.constant 0.00244194292 : f32
    %309 = vector.broadcast %cst_121 : f32 to vector<32x32xf32>
    %310 = arith.mulf %309, %291 : vector<32x32xf32>
    %cst_122 = arith.constant 200.400406 : f32
    %311 = vector.broadcast %cst_122 : f32 to vector<32x32xf32>
    %312 = arith.mulf %297, %311 : vector<32x32xf32>
    %313 = math.sqrt %312 : vector<32x32xf32>
    %cst_123 = arith.constant 9.99999993E-9 : f32
    %314 = vector.broadcast %cst_123 : f32 to vector<32x32xf32>
    %315 = arith.addf %313, %314 : vector<32x32xf32>
    %316 = tpu.reciprocal %315 {approx = true} : vector<32x32xf32> -> vector<32x32xf32>
    %317 = arith.mulf %310, %316 : vector<32x32xf32>
    %318 = arith.subf %255, %317 : vector<32x32xf32>
    %cst_124 = arith.constant 0.00244194292 : f32
    %319 = vector.broadcast %cst_124 : f32 to vector<1x32xf32>
    %320 = arith.mulf %319, %302 : vector<1x32xf32>
    %cst_125 = arith.constant 200.400406 : f32
    %321 = vector.broadcast %cst_125 : f32 to vector<1x32xf32>
    %322 = arith.mulf %308, %321 : vector<1x32xf32>
    %323 = math.sqrt %322 : vector<1x32xf32>
    %cst_126 = arith.constant 9.99999993E-9 : f32
    %324 = vector.broadcast %cst_126 : f32 to vector<1x32xf32>
    %325 = arith.addf %323, %324 : vector<1x32xf32>
    %326 = tpu.reciprocal %325 {approx = true} : vector<1x32xf32> -> vector<1x32xf32>
    %327 = arith.mulf %320, %326 : vector<1x32xf32>
    %328 = arith.subf %265, %327 : vector<1x32xf32>
    %cst_127 = arith.constant dense<0.000000e+00> : vector<32x32xf32>
    %329 = tpu.matmul %2, %318, %cst_127 {dimension_numbers = #tpu.dot_dimension_numbers<[1], [0], [0], [1], [0, 0, 1, 1], [], []>} : vector<32x32xf32>, vector<32x32xf32>, vector<32x32xf32> -> vector<32x32xf32>
    %330 = vector.broadcast %328 : vector<1x32xf32> to vector<32x32xf32>
    %331 = arith.addf %329, %330 : vector<32x32xf32>
    %332 = arith.addf %331, %8 : vector<32x32xf32>
    %cst_128 = arith.constant dense<0xFF800000> : vector<32xf32>
    %333 = vector.multi_reduction <maximumf>, %332, %cst_128 [1] : vector<32x32xf32> to vector<32xf32>
    %334 = vector.shape_cast %333 : vector<32xf32> to vector<32x1xf32>
    %335 = vector.broadcast %334 : vector<32x1xf32> to vector<32x32xf32>
    %336 = arith.subf %332, %335 : vector<32x32xf32>
    %337 = math.exp %336 : vector<32x32xf32>
    %cst_129 = arith.constant dense<0.000000e+00> : vector<32xf32>
    %338 = vector.multi_reduction <add>, %337, %cst_129 [1] : vector<32x32xf32> to vector<32xf32>
    %339 = vector.shape_cast %338 : vector<32xf32> to vector<32x1xf32>
    %340 = math.log %339 : vector<32x1xf32>
    %341 = arith.addf %334, %340 : vector<32x1xf32>
    %342 = arith.mulf %332, %6 : vector<32x32xf32>
    %cst_130 = arith.constant dense<0.000000e+00> : vector<32xf32>
    %343 = vector.multi_reduction <add>, %342, %cst_130 [1] : vector<32x32xf32> to vector<32xf32>
    %344 = vector.shape_cast %343 : vector<32xf32> to vector<32x1xf32>
    %345 = arith.subf %341, %344 : vector<32x1xf32>
    %346 = vector.broadcast %334 : vector<32x1xf32> to vector<32x32xf32>
    %347 = arith.cmpf oge, %332, %346 : vector<32x32xf32>
    %348 = arith.extui %347 : vector<32x32xi1> to vector<32x32xi32>
    %349 = arith.sitofp %348 : vector<32x32xi32> to vector<32x32xf32>
    %350 = arith.mulf %6, %349 : vector<32x32xf32>
    %cst_131 = arith.constant dense<0.000000e+00> : vector<32xf32>
    %351 = vector.multi_reduction <add>, %350, %cst_131 [1] : vector<32x32xf32> to vector<32xf32>
    %352 = vector.shape_cast %351 : vector<32xf32> to vector<32x1xf32>
    %353 = vector.broadcast %345 : vector<32x1xf32> to vector<32x4xf32>
    %354 = arith.mulf %353, %9 : vector<32x4xf32>
    %cst_132 = arith.constant dense<0.000000e+00> : vector<4xf32>
    %355 = vector.multi_reduction <add>, %354, %cst_132 [0] : vector<32x4xf32> to vector<4xf32>
    %356 = vector.shape_cast %355 : vector<4xf32> to vector<1x4xf32>
    %cst_133 = arith.constant 1.250000e-01 : f32
    %357 = vector.broadcast %cst_133 : f32 to vector<1x4xf32>
    %358 = arith.mulf %356, %357 : vector<1x4xf32>
    %359 = vector.broadcast %352 : vector<32x1xf32> to vector<32x4xf32>
    %360 = arith.mulf %359, %9 : vector<32x4xf32>
    %cst_134 = arith.constant dense<0.000000e+00> : vector<4xf32>
    %361 = vector.multi_reduction <add>, %360, %cst_134 [0] : vector<32x4xf32> to vector<4xf32>
    %362 = vector.shape_cast %361 : vector<4xf32> to vector<1x4xf32>
    %cst_135 = arith.constant 1.250000e-01 : f32
    %363 = vector.broadcast %cst_135 : f32 to vector<1x4xf32>
    %364 = arith.mulf %362, %363 : vector<1x4xf32>
    %365 = tpu.concatenate %358, %364 in 0 : vector<1x4xf32>, vector<1x4xf32> -> vector<2x4xf32>
    %c0_136 = arith.constant 0 : index
    %c0_137 = arith.constant 0 : index
    %366 = vector.load %arg11[%c0_136, %c0_137] : memref<2x4xf32, #tpu.memory_space<vmem>>, vector<2x4xf32>
    tpu.vector_store %arg11[%c0_136, %c0_137], %365 {strides = array<i32>} : memref<2x4xf32, #tpu.memory_space<vmem>>, vector<2x4xf32>,
    return
  }
  func.func @transform_0(%arg0: i32) -> (i32, i32) {
    %c0_i32 = arith.constant 0 : i32
    %c0_i32_0 = arith.constant 0 : i32
    %c0_i32_1 = arith.constant 0 : i32
    return %c0_i32, %c0_i32_0 : i32, i32
  }
  func.func @transform_1(%arg0: i32) -> (i32, i32) {
    %c0_i32 = arith.constant 0 : i32
    %c0_i32_0 = arith.constant 0 : i32
    %c0_i32_1 = arith.constant 0 : i32
    return %c0_i32, %c0_i32_0 : i32, i32
  }
  func.func @transform_2(%arg0: i32) -> (i32, i32) {
    %c0_i32 = arith.constant 0 : i32
    %c0_i32_0 = arith.constant 0 : i32
    %c0_i32_1 = arith.constant 0 : i32
    return %c0_i32, %c0_i32_0 : i32, i32
  }
  func.func @transform_3(%arg0: i32) -> (i32, i32) {
    %c0_i32 = arith.constant 0 : i32
    %c0_i32_0 = arith.constant 0 : i32
    %c0_i32_1 = arith.constant 0 : i32
    return %c0_i32, %c0_i32_0 : i32, i32
  }
  func.func @transform_4(%arg0: i32) -> (i32, i32) {
    %c0_i32 = arith.constant 0 : i32
    %c0_i32_0 = arith.constant 0 : i32
    %c0_i32_1 = arith.constant 0 : i32
    return %c0_i32, %c0_i32_0 : i32, i32
  }
  func.func @transform_5(%arg0: i32) -> (i32, i32) {
    %c0_i32 = arith.constant 0 : i32
    %c0_i32_0 = arith.constant 0 : i32
    %c0_i32_1 = arith.constant 0 : i32
    return %c0_i32, %c0_i32_0 : i32, i32
  }
  func.func @transform_6(%arg0: i32) -> (i32, i32) {
    %c0_i32 = arith.constant 0 : i32
    %c0_i32_0 = arith.constant 0 : i32
    %c0_i32_1 = arith.constant 0 : i32
    return %c0_i32, %c0_i32_0 : i32, i32
  }
  func.func @transform_7(%arg0: i32) -> (i32, i32) {
    %c0_i32 = arith.constant 0 : i32
    %c0_i32_0 = arith.constant 0 : i32
    %c0_i32_1 = arith.constant 0 : i32
    return %c0_i32, %c0_i32_0 : i32, i32
  }
  func.func @transform_8(%arg0: i32) -> (i32, i32) {
    %c0_i32 = arith.constant 0 : i32
    %c0_i32_0 = arith.constant 0 : i32
    %c0_i32_1 = arith.constant 0 : i32
    return %c0_i32, %c0_i32_0 : i32, i32
  }
  func.func @transform_9(%arg0: i32) -> (i32, i32) {
    %c0_i32 = arith.constant 0 : i32
    %c0_i32_0 = arith.constant 0 : i32
    %c0_i32_1 = arith.constant 0 : i32
    return %c0_i32, %c0_i32_0 : i32, i32
  }
  func.func @transform_10(%arg0: i32) -> (i32, i32) {
    %c0_i32 = arith.constant 0 : i32
    %c0_i32_0 = arith.constant 0 : i32
    %c0_i32_1 = arith.constant 0 : i32
    return %c0_i32, %c0_i32_0 : i32, i32
  }
}

</mosaic_0001>

<llo_original>
// kernel: eq.62
$region0: #{eq.62}
  %s0 = inlined_call_operand.vmem [shape: s32[4,8], index: 0, kind: input, shape index: {}]
  %s1 = inlined_call_operand.vmem [shape: s32[32], index: 1, kind: output, shape index: {}]
  $region1: #{eq.62} parent=0
    #allocation0 [shape = 'u8[4096]{0}', space=vmem, size = 0x1000, scoped, tag = 'scoped mem for output reshape']
    #allocation1 [shape = 'u8[4096]{0}', space=vmem, size = 0x1000, scoped, tag = 'scoped mem for input reshape']
    %s3 = sshllo.u32 0, 4
    %v4 = vld [vmem:[%s0] sm:%s3]
    %5 = vst [vmem:[#allocation1] sm:%s3] %v4
    %v6 = vld [vmem:[#allocation1] sm:$0x1]
    %vm7 = vcmask 64512
    %8 = vst.msk [vmem:[#allocation0] sm:$0x1] %vm7, %v6
    %s9 = scalar_lea.vmem [#allocation1], 3
    %v10 = vld [vmem:[%s9] sm:$0x1]
    %11 = vrot.lane.b32.xlu0 %v10, 24
    %v12 = vpop.permute.xlu0 %11
    %vm13 = vcmask 261312
    %14 = vst.msk [vmem:[#allocation0] sm:$0x1] %vm13, %v12
    %s15 = scalar_lea.vmem [#allocation1], 2
    %v16 = vld [vmem:[%s15] sm:$0x1]
    %17 = vrot.lane.b32.xlu0 %v16, 16
    %v18 = vpop.permute.xlu0 %17
    %vm19 = vcmask 195712
    %20 = vst.msk [vmem:[#allocation0] sm:$0x1] %vm19, %v18
    %s21 = scalar_lea.vmem [#allocation1], 1
    %v22 = vld [vmem:[%s21] sm:$0x1]
    %23 = vrot.lane.b32.xlu0 %v22, 8
    %v24 = vpop.permute.xlu0 %23
    %vm25 = vcmask 130112
    %26 = vst.msk [vmem:[#allocation0] sm:$0x1] %vm25, %v24
    %s28 = sshllo.u32 0, 1
    %v30 = vld [vmem:[#allocation0] sm:%s28]
    %s31 = sshllo.u32 0, 1
    %32 = vst [vmem:[%s1] sm:%s31] %v30

// kernel: maml_forward_pallas.1
$region0: #{maml_forward_pallas.1}
  #allocation0 [shape = 'u32[]', space=smem, size = 0x4, offset = 0x4, fixed_abs, tag = 'smem constant byte address 0x4 - core index']
  #allocation1 [shape = 'u32[144,128]{1,0:T(1,128)}', space=vmem, size = 0x12000, scoped, tag = 'internal scratch']
  %s0 = inlined_call_operand.vmem [shape: f32[32,32], index: 0, kind: input, shape index: {}]
  %s1 = inlined_call_operand.vmem [shape: f32[32,32], index: 1, kind: input, shape index: {}]
  %s2 = inlined_call_operand.vmem [shape: f32[32,32], index: 2, kind: input, shape index: {}]
  %s3 = inlined_call_operand.vmem [shape: f32[32,32], index: 3, kind: input, shape index: {}]
  %s4 = inlined_call_operand.vmem [shape: f32[1,32], index: 4, kind: input, shape index: {}]
  %s5 = inlined_call_operand.vmem [shape: f32[32,32], index: 5, kind: input, shape index: {}]
  %s6 = inlined_call_operand.vmem [shape: f32[32,32], index: 6, kind: input, shape index: {}]
  %s7 = inlined_call_operand.vmem [shape: f32[32,32], index: 7, kind: input, shape index: {}, may-alias: {7,8}]
  %s8 = inlined_call_operand.vmem [shape: f32[32,32], index: 8, kind: input, shape index: {}, may-alias: {7,8}]
  %s9 = inlined_call_operand.vmem [shape: f32[32,4], index: 9, kind: input, shape index: {}]
  %s10 = inlined_call_operand.vmem [shape: f32[2,4], index: 10, kind: output, shape index: {}]
  %s11 = sld [smem:[#allocation0]]
  $region50: #{maml_forward_pallas.1} parent=0
    _
  %s13 = ssub.s32 1, %s11
  %s14 = scalar_select 0, %s13, %s11
  // Predicated region
  $region2: #{maml_forward_pallas.1} parent=0 // pred_check
    _
  $region3: #{maml_forward_pallas.1} parent=0 // pred_check_branch
    %16 = sbr.rel (0) target = $region5
  $region4: #{maml_forward_pallas.1} parent=0 // pred_region
    _
  $region5: #{maml_forward_pallas.1} parent=0 // pred_fallthru
    _
  // Predicated region
  $region6: #{maml_forward_pallas.1} parent=0 // pred_check
    _
  $region7: #{maml_forward_pallas.1} parent=0 // pred_check_branch
    %18 = sbr.rel (0) target = $region9
  $region8: #{maml_forward_pallas.1} parent=0 // pred_region
    _
  $region9: #{maml_forward_pallas.1} parent=0 // pred_fallthru
    _
  // Predicated region
  $region10: #{maml_forward_pallas.1} parent=0 // pred_check
    _
  $region11: #{maml_forward_pallas.1} parent=0 // pred_check_branch
    %20 = sbr.rel (0) target = $region13
  $region12: #{maml_forward_pallas.1} parent=0 // pred_region
    _
  $region13: #{maml_forward_pallas.1} parent=0 // pred_fallthru
    _
  // Predicated region
  $region14: #{maml_forward_pallas.1} parent=0 // pred_check
    _
  $region15: #{maml_forward_pallas.1} parent=0 // pred_check_branch
    %22 = sbr.rel (0) target = $region17
  $region16: #{maml_forward_pallas.1} parent=0 // pred_region
    _
  $region17: #{maml_forward_pallas.1} parent=0 // pred_fallthru
    _
  // Predicated region
  $region18: #{maml_forward_pallas.1} parent=0 // pred_check
    _
  $region19: #{maml_forward_pallas.1} parent=0 // pred_check_branch
    %24 = sbr.rel (0) target = $region21
  $region20: #{maml_forward_pallas.1} parent=0 // pred_region
    _
  $region21: #{maml_forward_pallas.1} parent=0 // pred_fallthru
    _
  // Predicated region
  $region22: #{maml_forward_pallas.1} parent=0 // pred_check
    _
  $region23: #{maml_forward_pallas.1} parent=0 // pred_check_branch
    %26 = sbr.rel (0) target = $region25
  $region24: #{maml_forward_pallas.1} parent=0 // pred_region
    _
  $region25: #{maml_forward_pallas.1} parent=0 // pred_fallthru
    _
  // Predicated region
  $region26: #{maml_forward_pallas.1} parent=0 // pred_check
    _
  $region27: #{maml_forward_pallas.1} parent=0 // pred_check_branch
    %28 = sbr.rel (0) target = $region29
  $region28: #{maml_forward_pallas.1} parent=0 // pred_region
    _
  $region29: #{maml_forward_pallas.1} parent=0 // pred_fallthru
    _
  // Predicated region
  $region30: #{maml_forward_pallas.1} parent=0 // pred_check
    _
  $region31: #{maml_forward_pallas.1} parent=0 // pred_check_branch
    %30 = sbr.rel (0) target = $region33
  $region32: #{maml_forward_pallas.1} parent=0 // pred_region
    _
  $region33: #{maml_forward_pallas.1} parent=0 // pred_fallthru
    _
  // Predicated region
  $region34: #{maml_forward_pallas.1} parent=0 // pred_check
    _
  $region35: #{maml_forward_pallas.1} parent=0 // pred_check_branch
    %32 = sbr.rel (0) target = $region37
  $region36: #{maml_forward_pallas.1} parent=0 // pred_region
    _
  $region37: #{maml_forward_pallas.1} parent=0 // pred_fallthru
    _
  // Predicated region
  $region38: #{maml_forward_pallas.1} parent=0 // pred_check
    _
  $region39: #{maml_forward_pallas.1} parent=0 // pred_check_branch
    %34 = sbr.rel (0) target = $region41
  $region40: #{maml_forward_pallas.1} parent=0 // pred_region
    _
  $region41: #{maml_forward_pallas.1} parent=0 // pred_fallthru
    _
  %v35 = vld [vmem:[%s0] sm:$0xff]
  %v36 = vld [vmem:[%s0 + $0x8] sm:$0xff]
  %v37 = vld [vmem:[%s0 + $0x10] sm:$0xff]
  %v38 = vld [vmem:[%s0 + $0x18] sm:$0xff]
  %v39 = vld [vmem:[%s1] sm:$0xff]
  %v40 = vld [vmem:[%s1 + $0x8] sm:$0xff]
  %v41 = vld [vmem:[%s1 + $0x10] sm:$0xff]
  %v42 = vld [vmem:[%s1 + $0x18] sm:$0xff]
  %v43 = vld [vmem:[%s2] sm:$0xff]
  %v44 = vld [vmem:[%s2 + $0x8] sm:$0xff]
  %v45 = vld [vmem:[%s2 + $0x10] sm:$0xff]
  %v46 = vld [vmem:[%s2 + $0x18] sm:$0xff]
  %v47 = vld [vmem:[%s3] sm:$0xff]
  %v48 = vld [vmem:[%s3 + $0x8] sm:$0xff]
  %v49 = vld [vmem:[%s3 + $0x10] sm:$0xff]
  %v50 = vld [vmem:[%s3 + $0x18] sm:$0xff]
  %v51 = vld [vmem:[%s4] sm:$0x1]
  %v52 = vld [vmem:[%s5] sm:$0xff]
  %v53 = vld [vmem:[%s5 + $0x8] sm:$0xff]
  %v54 = vld [vmem:[%s5 + $0x10] sm:$0xff]
  %v55 = vld [vmem:[%s5 + $0x18] sm:$0xff]
  %v56 = vld [vmem:[%s6] sm:$0xff]
  %v57 = vld [vmem:[%s6 + $0x8] sm:$0xff]
  %v58 = vld [vmem:[%s6 + $0x10] sm:$0xff]
  %v59 = vld [vmem:[%s6 + $0x18] sm:$0xff]
  %v60 = vld [vmem:[%s7] sm:$0xff]
  %v61 = vld [vmem:[%s7 + $0x8] sm:$0xff]
  %v62 = vld [vmem:[%s7 + $0x10] sm:$0xff]
  %v63 = vld [vmem:[%s7 + $0x18] sm:$0xff]
  %v64 = vld [vmem:[%s8] sm:$0xff]
  %v65 = vld [vmem:[%s8 + $0x8] sm:$0xff]
  %v66 = vld [vmem:[%s8 + $0x10] sm:$0xff]
  %v67 = vld [vmem:[%s8 + $0x18] sm:$0xff]
  %v68 = vld [vmem:[%s9] sm:$0xff]
  %v69 = vld [vmem:[%s9 + $0x8] sm:$0xff]
  %v70 = vld [vmem:[%s9 + $0x10] sm:$0xff]
  %v71 = vld [vmem:[%s9 + $0x18] sm:$0xff]
  %v73 = vlaneseq
  %v74 = vshrl.u32 %v73, 7
  %v75 = vsub.s32 0, %v74
  %v76 = vrot.slane %v51, %v75
  %vm78 = vcmask 261120
  %v80 = vsel %vm78, %v35, 0
  %v83 = vsel %vm78, %v36, 0
  %v86 = vsel %vm78, %v37, 0
  %v89 = vsel %vm78, %v38, 0
  %91 = vmatprep.subr.mxu0 0.0
  %92 = vmatpush1.msra.mxu0 %v47
  %93 = vmatprep.subr.mxu0 0.0
  %94 = vmatpush1.msra.mxu0 %v48
  %95 = vmatprep.subr.mxu0 0.0
  %96 = vmatpush1.msra.mxu0 %v49
  %97 = vmatprep.subr.mxu0 0.0
  %98 = vmatpush1.msra.mxu0 %v50
  %99 = vmatprep.subr.mxu0 0.0
  %100 = vmatpush1.msra.mxu0 0.0
  %101 = vmatprep.subr.mxu0 0.0
  %102 = vmatpush1.msra.mxu0 0.0
  %103 = vmatprep.subr.mxu0 0.0
  %104 = vmatpush1.msra.mxu0 0.0
  %105 = vmatprep.subr.mxu0 0.0
  %106 = vmatpush1.msra.mxu0 0.0
  %107 = vmatprep.subr.mxu0 0.0
  %108 = vmatpush1.msra.mxu0 0.0
  %109 = vmatprep.subr.mxu0 0.0
  %110 = vmatpush1.msra.mxu0 0.0
  %111 = vmatprep.subr.mxu0 0.0
  %112 = vmatpush1.msra.mxu0 0.0
  %113 = vmatprep.subr.mxu0 0.0
  %114 = vmatpush1.msra.mxu0 0.0
  %115 = vmatprep.subr.mxu0 0.0
  %116 = vmatpush1.msra.mxu0 0.0
  %117 = vmatprep.subr.mxu0 0.0
  %118 = vmatpush1.msra.mxu0 0.0
  %119 = vmatprep.subr.mxu0 0.0
  %120 = vmatpush1.msra.mxu0 0.0
  %121 = vmatprep.subr.mxu0 0.0
  %122 = vmatpush1.msra.mxu0 0.0
  %123 = vmatprep.subr.mxu0 0.0
  %124 = vmatpush1.msra.mxu0 0.0
  %125 = vmatprep.subr.mxu0 0.0
  %126 = vmatpush1.msra.mxu0 0.0
  %127 = vmatprep.subr.mxu0 0.0
  %128 = vmatpush1.msra.mxu0 0.0
  %129 = vmatprep.subr.mxu0 0.0
  %130 = vmatpush1.msra.mxu0 0.0
  %131 = vmatprep.subr.mxu0 0.0
  %132 = vmatpush1.msra.mxu0 0.0
  %133 = vmatprep.subr.mxu0 0.0
  %134 = vmatpush1.msra.mxu0 0.0
  %135 = vmatprep.subr.mxu0 0.0
  %136 = vmatpush1.msra.mxu0 0.0
  %137 = vmatprep.subr.mxu0 0.0
  %138 = vmatpush1.msra.mxu0 0.0
  %139 = vmatprep.subr.mxu0 0.0
  %140 = vmatpush1.msra.mxu0 0.0
  %141 = vmatprep.subr.mxu0 0.0
  %142 = vmatpush1.msra.mxu0 0.0
  %143 = vmatprep.subr.mxu0 0.0
  %144 = vmatpush1.msra.mxu0 0.0
  %145 = vmatprep.subr.mxu0 0.0
  %146 = vmatpush1.msra.mxu0 0.0
  %147 = vmatprep.subr.mxu0 0.0
  %148 = vmatpush1.msra.mxu0 0.0
  %149 = vmatprep.subr.mxu0 0.0
  %150 = vmatpush1.msra.mxu0 0.0
  %151 = vmatprep.subr.mxu0 0.0
  %152 = vmatpush1.msra.mxu0 0.0
  %153 = vmatprep.subr.mxu0 0.0
  %154 = vmatpush1.msra.mxu0 0.0
  %155 = vmatprep.mubr.f32.mxu0 0.0
  %156 = vmatmul.mubr.f32.gmra.mrb[0].mxu0 %v80
  %v157 = vpop.f32.mrb[0].mxu0
  %v158 = vadd.f32 %v76, %v157
  %v159 = vpop.f32.mrb[0].mxu0
  %160 = vmatprep.mubr.f32.mxu0 0.0
  %161 = vmatmul.mubr.f32.gmra.mrb[0].mxu0 %v83
  %v162 = vpop.f32.mrb[0].mxu0
  %v163 = vadd.f32 %v76, %v162
  %v164 = vpop.f32.mrb[0].mxu0
  %165 = vmatprep.mubr.f32.mxu0 0.0
  %166 = vmatmul.mubr.f32.gmra.mrb[0].mxu0 %v86
  %v167 = vpop.f32.mrb[0].mxu0
  %v168 = vadd.f32 %v76, %v167
  %v169 = vpop.f32.mrb[0].mxu0
  %170 = vmatprep.mubr.f32.mxu0 0.0
  %171 = vmatmul.mubr.f32.gmra.mrb[0].mxu0 %v89
  %v172 = vpop.f32.mrb[0].mxu0
  %v173 = vadd.f32 %v76, %v172
  %v174 = vpop.f32.mrb[0].mxu0
  %175 = vdwg.mxu0
  %v176 = vadd.f32 %v158, %v60
  %v177 = vadd.f32 %v163, %v61
  %v178 = vadd.f32 %v168, %v62
  %v179 = vadd.f32 %v173, %v63
  %v180 = vsel %vm78, %v176, -inf
  %181 = vmax.xlane.f32.xlu0 %v180
  %v182 = vpop.xlane.xlu0 %181
  %v183 = vsel %vm78, %v177, -inf
  %184 = vmax.xlane.f32.xlu0 %v183
  %v185 = vpop.xlane.xlu0 %184
  %v186 = vsel %vm78, %v178, -inf
  %187 = vmax.xlane.f32.xlu0 %v186
  %v188 = vpop.xlane.xlu0 %187
  %v189 = vsel %vm78, %v179, -inf
  %190 = vmax.xlane.f32.xlu0 %v189
  %v191 = vpop.xlane.xlu0 %190
  %v192 = vsub.f32 %v176, %v182
  %v193 = vsub.f32 %v177, %v185
  %v194 = vsub.f32 %v178, %v188
  %v195 = vsub.f32 %v179, %v191
  %v196 = vmul.f32 %v192, 1.442695
  %v197 = vpow.pop %v196
  %v198 = vmul.f32 %v193, 1.442695
  %v199 = vpow.pop %v198
  %v200 = vmul.f32 %v194, 1.442695
  %v201 = vpow.pop %v200
  %v202 = vmul.f32 %v195, 1.442695
  %v203 = vpow.pop %v202
  %v204 = vsel %vm78, %v197, 0.0
  %205 = vadd.xlane.f32.xlu0 %v204
  %v206 = vpop.xlane.xlu0 %205
  %v207 = vsel %vm78, %v199, 0.0
  %208 = vadd.xlane.f32.xlu0 %v207
  %v209 = vpop.xlane.xlu0 %208
  %v210 = vsel %vm78, %v201, 0.0
  %211 = vadd.xlane.f32.xlu0 %v210
  %v212 = vpop.xlane.xlu0 %211
  %v213 = vsel %vm78, %v203, 0.0
  %214 = vadd.xlane.f32.xlu0 %v213
  %v215 = vpop.xlane.xlu0 %214
  %v216 = vrcp.pop %v206
  %v217 = vmul.f32 1.0, %v216
  %v218 = vrcp.pop %v209
  %v219 = vmul.f32 1.0, %v218
  %v220 = vrcp.pop %v212
  %v221 = vmul.f32 1.0, %v220
  %v222 = vrcp.pop %v215
  %v223 = vmul.f32 1.0, %v222
  %v224 = vmul.f32 %v197, %v217
  %v225 = vmul.f32 %v199, %v219
  %v226 = vmul.f32 %v201, %v221
  %v227 = vmul.f32 %v203, %v223
  %v228 = vsub.f32 %v224, %v52
  %v229 = vsub.f32 %v225, %v53
  %v230 = vsub.f32 %v226, %v54
  %v231 = vsub.f32 %v227, %v55
  %v232 = vmul.f32 %v228, 0.125
  %v233 = vmul.f32 %v229, 0.125
  %v234 = vmul.f32 %v230, 0.125
  %v235 = vmul.f32 %v231, 0.125
  %v237 = vsel %vm78, %v39, 0
  %v240 = vsel %vm78, %v40, 0
  %v243 = vsel %vm78, %v41, 0
  %v246 = vsel %vm78, %v42, 0
  %248 = vmatprep.subr.mxu0 0.0
  %249 = vmatpush1.msra.mxu0 %v232
  %250 = vmatprep.subr.mxu0 0.0
  %251 = vmatpush1.msra.mxu0 %v233
  %252 = vmatprep.subr.mxu0 0.0
  %253 = vmatpush1.msra.mxu0 %v234
  %254 = vmatprep.subr.mxu0 0.0
  %255 = vmatpush1.msra.mxu0 %v235
  %256 = vmatprep.subr.mxu0 0.0
  %257 = vmatpush1.msra.mxu0 0.0
  %258 = vmatprep.subr.mxu0 0.0
  %259 = vmatpush1.msra.mxu0 0.0
  %260 = vmatprep.subr.mxu0 0.0
  %261 = vmatpush1.msra.mxu0 0.0
  %262 = vmatprep.subr.mxu0 0.0
  %263 = vmatpush1.msra.mxu0 0.0
  %264 = vmatprep.subr.mxu0 0.0
  %265 = vmatpush1.msra.mxu0 0.0
  %266 = vmatprep.subr.mxu0 0.0
  %267 = vmatpush1.msra.mxu0 0.0
  %268 = vmatprep.subr.mxu0 0.0
  %269 = vmatpush1.msra.mxu0 0.0
  %270 = vmatprep.subr.mxu0 0.0
  %271 = vmatpush1.msra.mxu0 0.0
  %272 = vmatprep.subr.mxu0 0.0
  %273 = vmatpush1.msra.mxu0 0.0
  %274 = vmatprep.subr.mxu0 0.0
  %275 = vmatpush1.msra.mxu0 0.0
  %276 = vmatprep.subr.mxu0 0.0
  %277 = vmatpush1.msra.mxu0 0.0
  %278 = vmatprep.subr.mxu0 0.0
  %279 = vmatpush1.msra.mxu0 0.0
  %280 = vmatprep.subr.mxu0 0.0
  %281 = vmatpush1.msra.mxu0 0.0
  %282 = vmatprep.subr.mxu0 0.0
  %283 = vmatpush1.msra.mxu0 0.0
  %284 = vmatprep.subr.mxu0 0.0
  %285 = vmatpush1.msra.mxu0 0.0
  %286 = vmatprep.subr.mxu0 0.0
  %287 = vmatpush1.msra.mxu0 0.0
  %288 = vmatprep.subr.mxu0 0.0
  %289 = vmatpush1.msra.mxu0 0.0
  %290 = vmatprep.subr.mxu0 0.0
  %291 = vmatpush1.msra.mxu0 0.0
  %292 = vmatprep.subr.mxu0 0.0
  %293 = vmatpush1.msra.mxu0 0.0
  %294 = vmatprep.subr.mxu0 0.0
  %295 = vmatpush1.msra.mxu0 0.0
  %296 = vmatprep.subr.mxu0 0.0
  %297 = vmatpush1.msra.mxu0 0.0
  %298 = vmatprep.subr.mxu0 0.0
  %299 = vmatpush1.msra.mxu0 0.0
  %300 = vmatprep.subr.mxu0 0.0
  %301 = vmatpush1.msra.mxu0 0.0
  %302 = vmatprep.subr.mxu0 0.0
  %303 = vmatpush1.msra.mxu0 0.0
  %304 = vmatprep.subr.mxu0 0.0
  %305 = vmatpush1.msra.mxu0 0.0
  %306 = vmatprep.subr.mxu0 0.0
  %307 = vmatpush1.msra.mxu0 0.0
  %308 = vmatprep.subr.mxu0 0.0
  %309 = vmatpush1.msra.mxu0 0.0
  %310 = vmatprep.subr.mxu0 0.0
  %311 = vmatpush1.msra.mxu0 0.0
  %312 = vmatprep.mubr.f32.mxu0 0.0
  %313 = vmatmul.mubr.f32.gmra.mrb[0].mxu0 %v237
  %v314 = vpop.f32.mrb[0].mxu0
  %v315 = vadd.f32 0.0, %v314
  %v316 = vpop.f32.mrb[0].mxu0
  %317 = vmatprep.mubr.f32.mxu0 0.0
  %318 = vmatmul.mubr.f32.gmra.mrb[0].mxu0 %v240
  %v319 = vpop.f32.mrb[0].mxu0
  %v320 = vadd.f32 0.0, %v319
  %v321 = vpop.f32.mrb[0].mxu0
  %322 = vmatprep.mubr.f32.mxu0 0.0
  %323 = vmatmul.mubr.f32.gmra.mrb[0].mxu0 %v243
  %v324 = vpop.f32.mrb[0].mxu0
  %v325 = vadd.f32 0.0, %v324
  %v326 = vpop.f32.mrb[0].mxu0
  %327 = vmatprep.mubr.f32.mxu0 0.0
  %328 = vmatmul.mubr.f32.gmra.mrb[0].mxu0 %v246
  %v329 = vpop.f32.mrb[0].mxu0
  %v330 = vadd.f32 0.0, %v329
  %v331 = vpop.f32.mrb[0].mxu0
  %332 = vdwg.mxu0
  %v333 = vsel %vm78, %v232, 0.0
  %v334 = vsel %vm78, %v233, 0.0
  %v335 = vadd.f32 %v333, %v334
  %v336 = vsel %vm78, %v234, 0.0
  %v337 = vadd.f32 %v335, %v336
  %v338 = vsel %vm78, %v235, 0.0
  %v339 = vadd.f32 %v337, %v338
  %v340 = vrot.slane %v339, 4
  %v341 = vadd.f32 %v339, %v340
  %v342 = vrot.slane %v341, 2
  %v343 = vadd.f32 %v341, %v342
  %v344 = vrot.slane %v343, 1
  %v345 = vadd.f32 %v343, %v344
  %v346 = vmul.f32 %v315, 0.1
  %v347 = vmul.f32 %v320, 0.1
  %v348 = vmul.f32 %v325, 0.1
  %v349 = vmul.f32 %v330, 0.1
  %v350 = vadd.f32 %v346, 0.0
  %v351 = vadd.f32 %v347, 0.0
  %v352 = vadd.f32 %v348, 0.0
  %v353 = vadd.f32 %v349, 0.0
  %v354 = vmul.f32 %v315, %v315
  %v355 = vmul.f32 %v320, %v320
  %v356 = vmul.f32 %v325, %v325
  %v357 = vmul.f32 %v330, %v330
  %v358 = vmul.f32 %v354, 0.001
  %v359 = vmul.f32 %v355, 0.001
  %v360 = vmul.f32 %v356, 0.001
  %v361 = vmul.f32 %v357, 0.001
  %v362 = vadd.f32 %v358, 0.0
  %v363 = vadd.f32 %v359, 0.0
  %v364 = vadd.f32 %v360, 0.0
  %v365 = vadd.f32 %v361, 0.0
  %v366 = vmul.f32 %v345, 0.1
  %v367 = vadd.f32 %v366, 0.0
  %v368 = vmul.f32 %v345, %v345
  %v369 = vmul.f32 %v368, 0.001
  %v370 = vadd.f32 %v369, 0.0
  %v371 = vmul.f32 %v350, 0.01
  %v372 = vmul.f32 %v351, 0.01
  %v373 = vmul.f32 %v352, 0.01
  %v374 = vmul.f32 %v353, 0.01
  %v375 = vmul.f32 %v362, 1000.0
  %v376 = vmul.f32 %v363, 1000.0
  %v377 = vmul.f32 %v364, 1000.0
  %v378 = vmul.f32 %v365, 1000.0
  %v379 = vrsqrt.pop %v375
  %v380 = vmul.f32 %v375, %v379
  %vm381 = vcmp.eq.f32.partialorder %v375, inf
  %v382 = vsel %vm381, %v375, %v380
  %vm383 = vcmp.eq.f32.partialorder %v375, 0.0
  %v384 = vand.u32 %v375, 2147483648
  %v385 = vsel %vm383, %v384, %v382
  %v386 = vrsqrt.pop %v376
  %v387 = vmul.f32 %v376, %v386
  %vm388 = vcmp.eq.f32.partialorder %v376, inf
  %v389 = vsel %vm388, %v376, %v387
  %vm390 = vcmp.eq.f32.partialorder %v376, 0.0
  %v391 = vand.u32 %v376, 2147483648
  %v392 = vsel %vm390, %v391, %v389
  %v393 = vrsqrt.pop %v377
  %v394 = vmul.f32 %v377, %v393
  %vm395 = vcmp.eq.f32.partialorder %v377, inf
  %v396 = vsel %vm395, %v377, %v394
  %vm397 = vcmp.eq.f32.partialorder %v377, 0.0
  %v398 = vand.u32 %v377, 2147483648
  %v399 = vsel %vm397, %v398, %v396
  %v400 = vrsqrt.pop %v378
  %v401 = vmul.f32 %v378, %v400
  %vm402 = vcmp.eq.f32.partialorder %v378, inf
  %v403 = vsel %vm402, %v378, %v401
  %vm404 = vcmp.eq.f32.partialorder %v378, 0.0
  %v405 = vand.u32 %v378, 2147483648
  %v406 = vsel %vm404, %v405, %v403
  %v407 = vadd.f32 %v385, 1e-08
  %v408 = vadd.f32 %v392, 1e-08
  %v409 = vadd.f32 %v399, 1e-08
  %v410 = vadd.f32 %v406, 1e-08
  %v411 = vrcp.pop %v407
  %v412 = vrcp.pop %v408
  %v413 = vrcp.pop %v409
  %v414 = vrcp.pop %v410
  %v415 = vmul.f32 %v371, %v411
  %v416 = vmul.f32 %v372, %v412
  %v417 = vmul.f32 %v373, %v413
  %v418 = vmul.f32 %v374, %v414
  %v419 = vsub.f32 %v47, %v415
  %v420 = vsub.f32 %v48, %v416
  %v421 = vsub.f32 %v49, %v417
  %v422 = vsub.f32 %v50, %v418
  %v423 = vmul.f32 %v367, 0.01
  %v424 = vmul.f32 %v370, 1000.0
  %v425 = vrsqrt.pop %v424
  %v426 = vmul.f32 %v424, %v425
  %vm427 = vcmp.eq.f32.partialorder %v424, inf
  %v428 = vsel %vm427, %v424, %v426
  %vm429 = vcmp.eq.f32.partialorder %v424, 0.0
  %v430 = vand.u32 %v424, 2147483648
  %v431 = vsel %vm429, %v430, %v428
  %v432 = vadd.f32 %v431, 1e-08
  %v433 = vrcp.pop %v432
  %v434 = vmul.f32 %v423, %v433
  %v435 = vsub.f32 %v51, %v434
  %v437 = vlaneseq
  %v438 = vshrl.u32 %v437, 7
  %v439 = vsub.s32 0, %v438
  %v440 = vrot.slane %v435, %v439
  %442 = vmatprep.subr.mxu0 0.0
  %443 = vmatpush1.msra.mxu0 %v419
  %444 = vmatprep.subr.mxu0 0.0
  %445 = vmatpush1.msra.mxu0 %v420
  %446 = vmatprep.subr.mxu0 0.0
  %447 = vmatpush1.msra.mxu0 %v421
  %448 = vmatprep.subr.mxu0 0.0
  %449 = vmatpush1.msra.mxu0 %v422
  %450 = vmatprep.subr.mxu0 0.0
  %451 = vmatpush1.msra.mxu0 0.0
  %452 = vmatprep.subr.mxu0 0.0
  %453 = vmatpush1.msra.mxu0 0.0
  %454 = vmatprep.subr.mxu0 0.0
  %455 = vmatpush1.msra.mxu0 0.0
  %456 = vmatprep.subr.mxu0 0.0
  %457 = vmatpush1.msra.mxu0 0.0
  %458 = vmatprep.subr.mxu0 0.0
  %459 = vmatpush1.msra.mxu0 0.0
  %460 = vmatprep.subr.mxu0 0.0
  %461 = vmatpush1.msra.mxu0 0.0
  %462 = vmatprep.subr.mxu0 0.0
  %463 = vmatpush1.msra.mxu0 0.0
  %464 = vmatprep.subr.mxu0 0.0
  %465 = vmatpush1.msra.mxu0 0.0
  %466 = vmatprep.subr.mxu0 0.0
  %467 = vmatpush1.msra.mxu0 0.0
  %468 = vmatprep.subr.mxu0 0.0
  %469 = vmatpush1.msra.mxu0 0.0
  %470 = vmatprep.subr.mxu0 0.0
  %471 = vmatpush1.msra.mxu0 0.0
  %472 = vmatprep.subr.mxu0 0.0
  %473 = vmatpush1.msra.mxu0 0.0
  %474 = vmatprep.subr.mxu0 0.0
  %475 = vmatpush1.msra.mxu0 0.0
  %476 = vmatprep.subr.mxu0 0.0
  %477 = vmatpush1.msra.mxu0 0.0
  %478 = vmatprep.subr.mxu0 0.0
  %479 = vmatpush1.msra.mxu0 0.0
  %480 = vmatprep.subr.mxu0 0.0
  %481 = vmatpush1.msra.mxu0 0.0
  %482 = vmatprep.subr.mxu0 0.0
  %483 = vmatpush1.msra.mxu0 0.0
  %484 = vmatprep.subr.mxu0 0.0
  %485 = vmatpush1.msra.mxu0 0.0
  %486 = vmatprep.subr.mxu0 0.0
  %487 = vmatpush1.msra.mxu0 0.0
  %488 = vmatprep.subr.mxu0 0.0
  %489 = vmatpush1.msra.mxu0 0.0
  %490 = vmatprep.subr.mxu0 0.0
  %491 = vmatpush1.msra.mxu0 0.0
  %492 = vmatprep.subr.mxu0 0.0
  %493 = vmatpush1.msra.mxu0 0.0
  %494 = vmatprep.subr.mxu0 0.0
  %495 = vmatpush1.msra.mxu0 0.0
  %496 = vmatprep.subr.mxu0 0.0
  %497 = vmatpush1.msra.mxu0 0.0
  %498 = vmatprep.subr.mxu0 0.0
  %499 = vmatpush1.msra.mxu0 0.0
  %500 = vmatprep.subr.mxu0 0.0
  %501 = vmatpush1.msra.mxu0 0.0
  %502 = vmatprep.subr.mxu0 0.0
  %503 = vmatpush1.msra.mxu0 0.0
  %504 = vmatprep.subr.mxu0 0.0
  %505 = vmatpush1.msra.mxu0 0.0
  %506 = vmatprep.mubr.f32.mxu0 0.0
  %507 = vmatmul.mubr.f32.gmra.mrb[0].mxu0 %v80
  %v508 = vpop.f32.mrb[0].mxu0
  %v509 = vadd.f32 %v440, %v508
  %v510 = vpop.f32.mrb[0].mxu0
  %511 = vmatprep.mubr.f32.mxu0 0.0
  %512 = vmatmul.mubr.f32.gmra.mrb[0].mxu0 %v83
  %v513 = vpop.f32.mrb[0].mxu0
  %v514 = vadd.f32 %v440, %v513
  %v515 = vpop.f32.mrb[0].mxu0
  %516 = vmatprep.mubr.f32.mxu0 0.0
  %517 = vmatmul.mubr.f32.gmra.mrb[0].mxu0 %v86
  %v518 = vpop.f32.mrb[0].mxu0
  %v519 = vadd.f32 %v440, %v518
  %v520 = vpop.f32.mrb[0].mxu0
  %521 = vmatprep.mubr.f32.mxu0 0.0
  %522 = vmatmul.mubr.f32.gmra.mrb[0].mxu0 %v89
  %v523 = vpop.f32.mrb[0].mxu0
  %v524 = vadd.f32 %v440, %v523
  %v525 = vpop.f32.mrb[0].mxu0
  %526 = vdwg.mxu0
  %v527 = vadd.f32 %v509, %v60
  %v528 = vadd.f32 %v514, %v61
  %v529 = vadd.f32 %v519, %v62
  %v530 = vadd.f32 %v524, %v63
  %v531 = vsel %vm78, %v527, -inf
  %532 = vmax.xlane.f32.xlu0 %v531
  %v533 = vpop.xlane.xlu0 %532
  %v534 = vsel %vm78, %v528, -inf
  %535 = vmax.xlane.f32.xlu0 %v534
  %v536 = vpop.xlane.xlu0 %535
  %v537 = vsel %vm78, %v529, -inf
  %538 = vmax.xlane.f32.xlu0 %v537
  %v539 = vpop.xlane.xlu0 %538
  %v540 = vsel %vm78, %v530, -inf
  %541 = vmax.xlane.f32.xlu0 %v540
  %v542 = vpop.xlane.xlu0 %541
  %v543 = vsub.f32 %v527, %v533
  %v544 = vsub.f32 %v528, %v536
  %v545 = vsub.f32 %v529, %v539
  %v546 = vsub.f32 %v530, %v542
  %v547 = vmul.f32 %v543, 1.442695
  %v548 = vpow.pop %v547
  %v549 = vmul.f32 %v544, 1.442695
  %v550 = vpow.pop %v549
  %v551 = vmul.f32 %v545, 1.442695
  %v552 = vpow.pop %v551
  %v553 = vmul.f32 %v546, 1.442695
  %v554 = vpow.pop %v553
  %v555 = vsel %vm78, %v548, 0.0
  %556 = vadd.xlane.f32.xlu0 %v555
  %v557 = vpop.xlane.xlu0 %556
  %v558 = vsel %vm78, %v550, 0.0
  %559 = vadd.xlane.f32.xlu0 %v558
  %v560 = vpop.xlane.xlu0 %559
  %v561 = vsel %vm78, %v552, 0.0
  %562 = vadd.xlane.f32.xlu0 %v561
  %v563 = vpop.xlane.xlu0 %562
  %v564 = vsel %vm78, %v554, 0.0
  %565 = vadd.xlane.f32.xlu0 %v564
  %v566 = vpop.xlane.xlu0 %565
  %v567 = vrcp.pop %v557
  %v568 = vmul.f32 1.0, %v567
  %v569 = vrcp.pop %v560
  %v570 = vmul.f32 1.0, %v569
  %v571 = vrcp.pop %v563
  %v572 = vmul.f32 1.0, %v571
  %v573 = vrcp.pop %v566
  %v574 = vmul.f32 1.0, %v573
  %v575 = vmul.f32 %v548, %v568
  %v576 = vmul.f32 %v550, %v570
  %v577 = vmul.f32 %v552, %v572
  %v578 = vmul.f32 %v554, %v574
  %v579 = vsub.f32 %v575, %v52
  %v580 = vsub.f32 %v576, %v53
  %v581 = vsub.f32 %v577, %v54
  %v582 = vsub.f32 %v578, %v55
  %v583 = vmul.f32 %v579, 0.125
  %v584 = vmul.f32 %v580, 0.125
  %v585 = vmul.f32 %v581, 0.125
  %v586 = vmul.f32 %v582, 0.125
  %587 = vmatprep.subr.mxu0 0.0
  %588 = vmatpush1.msra.mxu0 %v583
  %589 = vmatprep.subr.mxu0 0.0
  %590 = vmatpush1.msra.mxu0 %v584
  %591 = vmatprep.subr.mxu0 0.0
  %592 = vmatpush1.msra.mxu0 %v585
  %593 = vmatprep.subr.mxu0 0.0
  %594 = vmatpush1.msra.mxu0 %v586
  %595 = vmatprep.subr.mxu0 0.0
  %596 = vmatpush1.msra.mxu0 0.0
  %597 = vmatprep.subr.mxu0 0.0
  %598 = vmatpush1.msra.mxu0 0.0
  %599 = vmatprep.subr.mxu0 0.0
  %600 = vmatpush1.msra.mxu0 0.0
  %601 = vmatprep.subr.mxu0 0.0
  %602 = vmatpush1.msra.mxu0 0.0
  %603 = vmatprep.subr.mxu0 0.0
  %604 = vmatpush1.msra.mxu0 0.0
  %605 = vmatprep.subr.mxu0 0.0
  %606 = vmatpush1.msra.mxu0 0.0
  %607 = vmatprep.subr.mxu0 0.0
  %608 = vmatpush1.msra.mxu0 0.0
  %609 = vmatprep.subr.mxu0 0.0
  %610 = vmatpush1.msra.mxu0 0.0
  %611 = vmatprep.subr.mxu0 0.0
  %612 = vmatpush1.msra.mxu0 0.0
  %613 = vmatprep.subr.mxu0 0.0
  %614 = vmatpush1.msra.mxu0 0.0
  %615 = vmatprep.subr.mxu0 0.0
  %616 = vmatpush1.msra.mxu0 0.0
  %617 = vmatprep.subr.mxu0 0.0
  %618 = vmatpush1.msra.mxu0 0.0
  %619 = vmatprep.subr.mxu0 0.0
  %620 = vmatpush1.msra.mxu0 0.0
  %621 = vmatprep.subr.mxu0 0.0
  %622 = vmatpush1.msra.mxu0 0.0
  %623 = vmatprep.subr.mxu0 0.0
  %624 = vmatpush1.msra.mxu0 0.0
  %625 = vmatprep.subr.mxu0 0.0
  %626 = vmatpush1.msra.mxu0 0.0
  %627 = vmatprep.subr.mxu0 0.0
  %628 = vmatpush1.msra.mxu0 0.0
  %629 = vmatprep.subr.mxu0 0.0
  %630 = vmatpush1.msra.mxu0 0.0
  %631 = vmatprep.subr.mxu0 0.0
  %632 = vmatpush1.msra.mxu0 0.0
  %633 = vmatprep.subr.mxu0 0.0
  %634 = vmatpush1.msra.mxu0 0.0
  %635 = vmatprep.subr.mxu0 0.0
  %636 = vmatpush1.msra.mxu0 0.0
  %637 = vmatprep.subr.mxu0 0.0
  %638 = vmatpush1.msra.mxu0 0.0
  %639 = vmatprep.subr.mxu0 0.0
  %640 = vmatpush1.msra.mxu0 0.0
  %641 = vmatprep.subr.mxu0 0.0
  %642 = vmatpush1.msra.mxu0 0.0
  %643 = vmatprep.subr.mxu0 0.0
  %644 = vmatpush1.msra.mxu0 0.0
  %645 = vmatprep.subr.mxu0 0.0
  %646 = vmatpush1.msra.mxu0 0.0
  %647 = vmatprep.subr.mxu0 0.0
  %648 = vmatpush1.msra.mxu0 0.0
  %649 = vmatprep.subr.mxu0 0.0
  %650 = vmatpush1.msra.mxu0 0.0
  %651 = vmatprep.mubr.f32.mxu0 0.0
  %652 = vmatmul.mubr.f32.gmra.mrb[0].mxu0 %v237
  %v653 = vpop.f32.mrb[0].mxu0
  %v654 = vadd.f32 0.0, %v653
  %v655 = vpop.f32.mrb[0].mxu0
  %656 = vmatprep.mubr.f32.mxu0 0.0
  %657 = vmatmul.mubr.f32.gmra.mrb[0].mxu0 %v240
  %v658 = vpop.f32.mrb[0].mxu0
  %v659 = vadd.f32 0.0, %v658
  %v660 = vpop.f32.mrb[0].mxu0
  %661 = vmatprep.mubr.f32.mxu0 0.0
  %662 = vmatmul.mubr.f32.gmra.mrb[0].mxu0 %v243
  %v663 = vpop.f32.mrb[0].mxu0
  %v664 = vadd.f32 0.0, %v663
  %v665 = vpop.f32.mrb[0].mxu0
  %666 = vmatprep.mubr.f32.mxu0 0.0
  %667 = vmatmul.mubr.f32.gmra.mrb[0].mxu0 %v246
  %v668 = vpop.f32.mrb[0].mxu0
  %v669 = vadd.f32 0.0, %v668
  %v670 = vpop.f32.mrb[0].mxu0
  %671 = vdwg.mxu0
  %v672 = vsel %vm78, %v583, 0.0
  %v673 = vsel %vm78, %v584, 0.0
  %v674 = vadd.f32 %v672, %v673
  %v675 = vsel %vm78, %v585, 0.0
  %v676 = vadd.f32 %v674, %v675
  %v677 = vsel %vm78, %v586, 0.0
  %v678 = vadd.f32 %v676, %v677
  %v679 = vrot.slane %v678, 4
  %v680 = vadd.f32 %v678, %v679
  %v681 = vrot.slane %v680, 2
  %v682 = vadd.f32 %v680, %v681
  %v683 = vrot.slane %v682, 1
  %v684 = vadd.f32 %v682, %v683
  %v685 = vmul.f32 %v350, 0.9
  %v686 = vmul.f32 %v351, 0.9
  %v687 = vmul.f32 %v352, 0.9
  %v688 = vmul.f32 %v353, 0.9
  %v689 = vmul.f32 %v654, 0.1
  %v690 = vmul.f32 %v659, 0.1
  %v691 = vmul.f32 %v664, 0.1
  %v692 = vmul.f32 %v669, 0.1
  %v693 = vadd.f32 %v685, %v689
  %v694 = vadd.f32 %v686, %v690
  %v695 = vadd.f32 %v687, %v691
  %v696 = vadd.f32 %v688, %v692
  %v697 = vmul.f32 %v362, 0.999
  %v698 = vmul.f32 %v363, 0.999
  %v699 = vmul.f32 %v364, 0.999
  %v700 = vmul.f32 %v365, 0.999
  %v701 = vmul.f32 %v654, %v654
  %v702 = vmul.f32 %v659, %v659
  %v703 = vmul.f32 %v664, %v664
  %v704 = vmul.f32 %v669, %v669
  %v705 = vmul.f32 %v701, 0.001
  %v706 = vmul.f32 %v702, 0.001
  %v707 = vmul.f32 %v703, 0.001
  %v708 = vmul.f32 %v704, 0.001
  %v709 = vadd.f32 %v697, %v705
  %v710 = vadd.f32 %v698, %v706
  %v711 = vadd.f32 %v699, %v707
  %v712 = vadd.f32 %v700, %v708
  %v713 = vmul.f32 %v367, 0.9
  %v714 = vmul.f32 %v684, 0.1
  %v715 = vadd.f32 %v713, %v714
  %v716 = vmul.f32 %v370, 0.999
  %v717 = vmul.f32 %v684, %v684
  %v718 = vmul.f32 %v717, 0.001
  %v719 = vadd.f32 %v716, %v718
  %v720 = vmul.f32 %v693, 0.005263158
  %v721 = vmul.f32 %v694, 0.005263158
  %v722 = vmul.f32 %v695, 0.005263158
  %v723 = vmul.f32 %v696, 0.005263158
  %v724 = vmul.f32 %v709, 500.25012
  %v725 = vmul.f32 %v710, 500.25012
  %v726 = vmul.f32 %v711, 500.25012
  %v727 = vmul.f32 %v712, 500.25012
  %v728 = vrsqrt.pop %v724
  %v729 = vmul.f32 %v724, %v728
  %vm730 = vcmp.eq.f32.partialorder %v724, inf
  %v731 = vsel %vm730, %v724, %v729
  %vm732 = vcmp.eq.f32.partialorder %v724, 0.0
  %v733 = vand.u32 %v724, 2147483648
  %v734 = vsel %vm732, %v733, %v731
  %v735 = vrsqrt.pop %v725
  %v736 = vmul.f32 %v725, %v735
  %vm737 = vcmp.eq.f32.partialorder %v725, inf
  %v738 = vsel %vm737, %v725, %v736
  %vm739 = vcmp.eq.f32.partialorder %v725, 0.0
  %v740 = vand.u32 %v725, 2147483648
  %v741 = vsel %vm739, %v740, %v738
  %v742 = vrsqrt.pop %v726
  %v743 = vmul.f32 %v726, %v742
  %vm744 = vcmp.eq.f32.partialorder %v726, inf
  %v745 = vsel %vm744, %v726, %v743
  %vm746 = vcmp.eq.f32.partialorder %v726, 0.0
  %v747 = vand.u32 %v726, 2147483648
  %v748 = vsel %vm746, %v747, %v745
  %v749 = vrsqrt.pop %v727
  %v750 = vmul.f32 %v727, %v749
  %vm751 = vcmp.eq.f32.partialorder %v727, inf
  %v752 = vsel %vm751, %v727, %v750
  %vm753 = vcmp.eq.f32.partialorder %v727, 0.0
  %v754 = vand.u32 %v727, 2147483648
  %v755 = vsel %vm753, %v754, %v752
  %v756 = vadd.f32 %v734, 1e-08
  %v757 = vadd.f32 %v741, 1e-08
  %v758 = vadd.f32 %v748, 1e-08
  %v759 = vadd.f32 %v755, 1e-08
  %v760 = vrcp.pop %v756
  %v761 = vrcp.pop %v757
  %v762 = vrcp.pop %v758
  %v763 = vrcp.pop %v759
  %v764 = vmul.f32 %v720, %v760
  %v765 = vmul.f32 %v721, %v761
  %v766 = vmul.f32 %v722, %v762
  %v767 = vmul.f32 %v723, %v763
  %v768 = vsub.f32 %v419, %v764
  %v769 = vsub.f32 %v420, %v765
  %v770 = vsub.f32 %v421, %v766
  %v771 = vsub.f32 %v422, %v767
  %v772 = vmul.f32 %v715, 0.005263158
  %v773 = vmul.f32 %v719, 500.25012
  %v774 = vrsqrt.pop %v773
  %v775 = vmul.f32 %v773, %v774
  %vm776 = vcmp.eq.f32.partialorder %v773, inf
  %v777 = vsel %vm776, %v773, %v775
  %vm778 = vcmp.eq.f32.partialorder %v773, 0.0
  %v779 = vand.u32 %v773, 2147483648
  %v780 = vsel %vm778, %v779, %v777
  %v781 = vadd.f32 %v780, 1e-08
  %v782 = vrcp.pop %v781
  %v783 = vmul.f32 %v772, %v782
  %v784 = vsub.f32 %v435, %v783
  %v786 = vlaneseq
  %v787 = vshrl.u32 %v786, 7
  %v788 = vsub.s32 0, %v787
  %v789 = vrot.slane %v784, %v788
  %791 = vmatprep.subr.mxu0 0.0
  %792 = vmatpush1.msra.mxu0 %v768
  %793 = vmatprep.subr.mxu0 0.0
  %794 = vmatpush1.msra.mxu0 %v769
  %795 = vmatprep.subr.mxu0 0.0
  %796 = vmatpush1.msra.mxu0 %v770
  %797 = vmatprep.subr.mxu0 0.0
  %798 = vmatpush1.msra.mxu0 %v771
  %799 = vmatprep.subr.mxu0 0.0
  %800 = vmatpush1.msra.mxu0 0.0
  %801 = vmatprep.subr.mxu0 0.0
  %802 = vmatpush1.msra.mxu0 0.0
  %803 = vmatprep.subr.mxu0 0.0
  %804 = vmatpush1.msra.mxu0 0.0
  %805 = vmatprep.subr.mxu0 0.0
  %806 = vmatpush1.msra.mxu0 0.0
  %807 = vmatprep.subr.mxu0 0.0
  %808 = vmatpush1.msra.mxu0 0.0
  %809 = vmatprep.subr.mxu0 0.0
  %810 = vmatpush1.msra.mxu0 0.0
  %811 = vmatprep.subr.mxu0 0.0
  %812 = vmatpush1.msra.mxu0 0.0
  %813 = vmatprep.subr.mxu0 0.0
  %814 = vmatpush1.msra.mxu0 0.0
  %815 = vmatprep.subr.mxu0 0.0
  %816 = vmatpush1.msra.mxu0 0.0
  %817 = vmatprep.subr.mxu0 0.0
  %818 = vmatpush1.msra.mxu0 0.0
  %819 = vmatprep.subr.mxu0 0.0
  %820 = vmatpush1.msra.mxu0 0.0
  %821 = vmatprep.subr.mxu0 0.0
  %822 = vmatpush1.msra.mxu0 0.0
  %823 = vmatprep.subr.mxu0 0.0
  %824 = vmatpush1.msra.mxu0 0.0
  %825 = vmatprep.subr.mxu0 0.0
  %826 = vmatpush1.msra.mxu0 0.0
  %827 = vmatprep.subr.mxu0 0.0
  %828 = vmatpush1.msra.mxu0 0.0
  %829 = vmatprep.subr.mxu0 0.0
  %830 = vmatpush1.msra.mxu0 0.0
  %831 = vmatprep.subr.mxu0 0.0
  %832 = vmatpush1.msra.mxu0 0.0
  %833 = vmatprep.subr.mxu0 0.0
  %834 = vmatpush1.msra.mxu0 0.0
  %835 = vmatprep.subr.mxu0 0.0
  %836 = vmatpush1.msra.mxu0 0.0
  %837 = vmatprep.subr.mxu0 0.0
  %838 = vmatpush1.msra.mxu0 0.0
  %839 = vmatprep.subr.mxu0 0.0
  %840 = vmatpush1.msra.mxu0 0.0
  %841 = vmatprep.subr.mxu0 0.0
  %842 = vmatpush1.msra.mxu0 0.0
  %843 = vmatprep.subr.mxu0 0.0
  %844 = vmatpush1.msra.mxu0 0.0
  %845 = vmatprep.subr.mxu0 0.0
  %846 = vmatpush1.msra.mxu0 0.0
  %847 = vmatprep.subr.mxu0 0.0
  %848 = vmatpush1.msra.mxu0 0.0
  %849 = vmatprep.subr.mxu0 0.0
  %850 = vmatpush1.msra.mxu0 0.0
  %851 = vmatprep.subr.mxu0 0.0
  %852 = vmatpush1.msra.mxu0 0.0
  %853 = vmatprep.subr.mxu0 0.0
  %854 = vmatpush1.msra.mxu0 0.0
  %855 = vmatprep.mubr.f32.mxu0 0.0
  %856 = vmatmul.mubr.f32.gmra.mrb[0].mxu0 %v80
  %v857 = vpop.f32.mrb[0].mxu0
  %v858 = vadd.f32 %v789, %v857
  %v859 = vpop.f32.mrb[0].mxu0
  %860 = vmatprep.mubr.f32.mxu0 0.0
  %861 = vmatmul.mubr.f32.gmra.mrb[0].mxu0 %v83
  %v862 = vpop.f32.mrb[0].mxu0
  %v863 = vadd.f32 %v789, %v862
  %v864 = vpop.f32.mrb[0].mxu0
  %865 = vmatprep.mubr.f32.mxu0 0.0
  %866 = vmatmul.mubr.f32.gmra.mrb[0].mxu0 %v86
  %v867 = vpop.f32.mrb[0].mxu0
  %v868 = vadd.f32 %v789, %v867
  %v869 = vpop.f32.mrb[0].mxu0
  %870 = vmatprep.mubr.f32.mxu0 0.0
  %871 = vmatmul.mubr.f32.gmra.mrb[0].mxu0 %v89
  %v872 = vpop.f32.mrb[0].mxu0
  %v873 = vadd.f32 %v789, %v872
  %v874 = vpop.f32.mrb[0].mxu0
  %875 = vdwg.mxu0
  %v876 = vadd.f32 %v858, %v60
  %v877 = vadd.f32 %v863, %v61
  %v878 = vadd.f32 %v868, %v62
  %v879 = vadd.f32 %v873, %v63
  %v880 = vsel %vm78, %v876, -inf
  %881 = vmax.xlane.f32.xlu0 %v880
  %v882 = vpop.xlane.xlu0 %881
  %v883 = vsel %vm78, %v877, -inf
  %884 = vmax.xlane.f32.xlu0 %v883
  %v885 = vpop.xlane.xlu0 %884
  %v886 = vsel %vm78, %v878, -inf
  %887 = vmax.xlane.f32.xlu0 %v886
  %v888 = vpop.xlane.xlu0 %887
  %v889 = vsel %vm78, %v879, -inf
  %890 = vmax.xlane.f32.xlu0 %v889
  %v891 = vpop.xlane.xlu0 %890
  %v892 = vsub.f32 %v876, %v882
  %v893 = vsub.f32 %v877, %v885
  %v894 = vsub.f32 %v878, %v888
  %v895 = vsub.f32 %v879, %v891
  %v896 = vmul.f32 %v892, 1.442695
  %v897 = vpow.pop %v896
  %v898 = vmul.f32 %v893, 1.442695
  %v899 = vpow.pop %v898
  %v900 = vmul.f32 %v894, 1.442695
  %v901 = vpow.pop %v900
  %v902 = vmul.f32 %v895, 1.442695
  %v903 = vpow.pop %v902
  %v904 = vsel %vm78, %v897, 0.0
  %905 = vadd.xlane.f32.xlu0 %v904
  %v906 = vpop.xlane.xlu0 %905
  %v907 = vsel %vm78, %v899, 0.0
  %908 = vadd.xlane.f32.xlu0 %v907
  %v909 = vpop.xlane.xlu0 %908
  %v910 = vsel %vm78, %v901, 0.0
  %911 = vadd.xlane.f32.xlu0 %v910
  %v912 = vpop.xlane.xlu0 %911
  %v913 = vsel %vm78, %v903, 0.0
  %914 = vadd.xlane.f32.xlu0 %v913
  %v915 = vpop.xlane.xlu0 %914
  %v916 = vrcp.pop %v906
  %v917 = vmul.f32 1.0, %v916
  %v918 = vrcp.pop %v909
  %v919 = vmul.f32 1.0, %v918
  %v920 = vrcp.pop %v912
  %v921 = vmul.f32 1.0, %v920
  %v922 = vrcp.pop %v915
  %v923 = vmul.f32 1.0, %v922
  %v924 = vmul.f32 %v897, %v917
  %v925 = vmul.f32 %v899, %v919
  %v926 = vmul.f32 %v901, %v921
  %v927 = vmul.f32 %v903, %v923
  %v928 = vsub.f32 %v924, %v52
  %v929 = vsub.f32 %v925, %v53
  %v930 = vsub.f32 %v926, %v54
  %v931 = vsub.f32 %v927, %v55
  %v932 = vmul.f32 %v928, 0.125
  %v933 = vmul.f32 %v929, 0.125
  %v934 = vmul.f32 %v930, 0.125
  %v935 = vmul.f32 %v931, 0.125
  %936 = vmatprep.subr.mxu0 0.0
  %937 = vmatpush1.msra.mxu0 %v932
  %938 = vmatprep.subr.mxu0 0.0
  %939 = vmatpush1.msra.mxu0 %v933
  %940 = vmatprep.subr.mxu0 0.0
  %941 = vmatpush1.msra.mxu0 %v934
  %942 = vmatprep.subr.mxu0 0.0
  %943 = vmatpush1.msra.mxu0 %v935
  %944 = vmatprep.subr.mxu0 0.0
  %945 = vmatpush1.msra.mxu0 0.0
  %946 = vmatprep.subr.mxu0 0.0
  %947 = vmatpush1.msra.mxu0 0.0
  %948 = vmatprep.subr.mxu0 0.0
  %949 = vmatpush1.msra.mxu0 0.0
  %950 = vmatprep.subr.mxu0 0.0
  %951 = vmatpush1.msra.mxu0 0.0
  %952 = vmatprep.subr.mxu0 0.0
  %953 = vmatpush1.msra.mxu0 0.0
  %954 = vmatprep.subr.mxu0 0.0
  %955 = vmatpush1.msra.mxu0 0.0
  %956 = vmatprep.subr.mxu0 0.0
  %957 = vmatpush1.msra.mxu0 0.0
  %958 = vmatprep.subr.mxu0 0.0
  %959 = vmatpush1.msra.mxu0 0.0
  %960 = vmatprep.subr.mxu0 0.0
  %961 = vmatpush1.msra.mxu0 0.0
  %962 = vmatprep.subr.mxu0 0.0
  %963 = vmatpush1.msra.mxu0 0.0
  %964 = vmatprep.subr.mxu0 0.0
  %965 = vmatpush1.msra.mxu0 0.0
  %966 = vmatprep.subr.mxu0 0.0
  %967 = vmatpush1.msra.mxu0 0.0
  %968 = vmatprep.subr.mxu0 0.0
  %969 = vmatpush1.msra.mxu0 0.0
  %970 = vmatprep.subr.mxu0 0.0
  %971 = vmatpush1.msra.mxu0 0.0
  %972 = vmatprep.subr.mxu0 0.0
  %973 = vmatpush1.msra.mxu0 0.0
  %974 = vmatprep.subr.mxu0 0.0
  %975 = vmatpush1.msra.mxu0 0.0
  %976 = vmatprep.subr.mxu0 0.0
  %977 = vmatpush1.msra.mxu0 0.0
  %978 = vmatprep.subr.mxu0 0.0
  %979 = vmatpush1.msra.mxu0 0.0
  %980 = vmatprep.subr.mxu0 0.0
  %981 = vmatpush1.msra.mxu0 0.0
  %982 = vmatprep.subr.mxu0 0.0
  %983 = vmatpush1.msra.mxu0 0.0
  %984 = vmatprep.subr.mxu0 0.0
  %985 = vmatpush1.msra.mxu0 0.0
  %986 = vmatprep.subr.mxu0 0.0
  %987 = vmatpush1.msra.mxu0 0.0
  %988 = vmatprep.subr.mxu0 0.0
  %989 = vmatpush1.msra.mxu0 0.0
  %990 = vmatprep.subr.mxu0 0.0
  %991 = vmatpush1.msra.mxu0 0.0
  %992 = vmatprep.subr.mxu0 0.0
  %993 = vmatpush1.msra.mxu0 0.0
  %994 = vmatprep.subr.mxu0 0.0
  %995 = vmatpush1.msra.mxu0 0.0
  %996 = vmatprep.subr.mxu0 0.0
  %997 = vmatpush1.msra.mxu0 0.0
  %998 = vmatprep.subr.mxu0 0.0
  %999 = vmatpush1.msra.mxu0 0.0
  %1000 = vmatprep.mubr.f32.mxu0 0.0
  %1001 = vmatmul.mubr.f32.gmra.mrb[0].mxu0 %v237
  %v1002 = vpop.f32.mrb[0].mxu0
  %v1003 = vadd.f32 0.0, %v1002
  %v1004 = vpop.f32.mrb[0].mxu0
  %1005 = vmatprep.mubr.f32.mxu0 0.0
  %1006 = vmatmul.mubr.f32.gmra.mrb[0].mxu0 %v240
  %v1007 = vpop.f32.mrb[0].mxu0
  %v1008 = vadd.f32 0.0, %v1007
  %v1009 = vpop.f32.mrb[0].mxu0
  %1010 = vmatprep.mubr.f32.mxu0 0.0
  %1011 = vmatmul.mubr.f32.gmra.mrb[0].mxu0 %v243
  %v1012 = vpop.f32.mrb[0].mxu0
  %v1013 = vadd.f32 0.0, %v1012
  %v1014 = vpop.f32.mrb[0].mxu0
  %1015 = vmatprep.mubr.f32.mxu0 0.0
  %1016 = vmatmul.mubr.f32.gmra.mrb[0].mxu0 %v246
  %v1017 = vpop.f32.mrb[0].mxu0
  %v1018 = vadd.f32 0.0, %v1017
  %v1019 = vpop.f32.mrb[0].mxu0
  %1020 = vdwg.mxu0
  %v1021 = vsel %vm78, %v932, 0.0
  %v1022 = vsel %vm78, %v933, 0.0
  %v1023 = vadd.f32 %v1021, %v1022
  %v1024 = vsel %vm78, %v934, 0.0
  %v1025 = vadd.f32 %v1023, %v1024
  %v1026 = vsel %vm78, %v935, 0.0
  %v1027 = vadd.f32 %v1025, %v1026
  %v1028 = vrot.slane %v1027, 4
  %v1029 = vadd.f32 %v1027, %v1028
  %v1030 = vrot.slane %v1029, 2
  %v1031 = vadd.f32 %v1029, %v1030
  %v1032 = vrot.slane %v1031, 1
  %v1033 = vadd.f32 %v1031, %v1032
  %v1034 = vmul.f32 %v693, 0.9
  %v1035 = vmul.f32 %v694, 0.9
  %v1036 = vmul.f32 %v695, 0.9
  %v1037 = vmul.f32 %v696, 0.9
  %v1038 = vmul.f32 %v1003, 0.1
  %v1039 = vmul.f32 %v1008, 0.1
  %v1040 = vmul.f32 %v1013, 0.1
  %v1041 = vmul.f32 %v1018, 0.1
  %v1042 = vadd.f32 %v1034, %v1038
  %v1043 = vadd.f32 %v1035, %v1039
  %v1044 = vadd.f32 %v1036, %v1040
  %v1045 = vadd.f32 %v1037, %v1041
  %v1046 = vmul.f32 %v709, 0.999
  %v1047 = vmul.f32 %v710, 0.999
  %v1048 = vmul.f32 %v711, 0.999
  %v1049 = vmul.f32 %v712, 0.999
  %v1050 = vmul.f32 %v1003, %v1003
  %v1051 = vmul.f32 %v1008, %v1008
  %v1052 = vmul.f32 %v1013, %v1013
  %v1053 = vmul.f32 %v1018, %v1018
  %v1054 = vmul.f32 %v1050, 0.001
  %v1055 = vmul.f32 %v1051, 0.001
  %v1056 = vmul.f32 %v1052, 0.001
  %v1057 = vmul.f32 %v1053, 0.001
  %v1058 = vadd.f32 %v1046, %v1054
  %v1059 = vadd.f32 %v1047, %v1055
  %v1060 = vadd.f32 %v1048, %v1056
  %v1061 = vadd.f32 %v1049, %v1057
  %v1062 = vmul.f32 %v715, 0.9
  %v1063 = vmul.f32 %v1033, 0.1
  %v1064 = vadd.f32 %v1062, %v1063
  %v1065 = vmul.f32 %v719, 0.999
  %v1066 = vmul.f32 %v1033, %v1033
  %v1067 = vmul.f32 %v1066, 0.001
  %v1068 = vadd.f32 %v1065, %v1067
  %v1069 = vmul.f32 %v1042, 0.003690037
  %v1070 = vmul.f32 %v1043, 0.003690037
  %v1071 = vmul.f32 %v1044, 0.003690037
  %v1072 = vmul.f32 %v1045, 0.003690037
  %v1073 = vmul.f32 %v1058, 333.6669
  %v1074 = vmul.f32 %v1059, 333.6669
  %v1075 = vmul.f32 %v1060, 333.6669
  %v1076 = vmul.f32 %v1061, 333.6669
  %v1077 = vrsqrt.pop %v1073
  %v1078 = vmul.f32 %v1073, %v1077
  %vm1079 = vcmp.eq.f32.partialorder %v1073, inf
  %v1080 = vsel %vm1079, %v1073, %v1078
  %vm1081 = vcmp.eq.f32.partialorder %v1073, 0.0
  %v1082 = vand.u32 %v1073, 2147483648
  %v1083 = vsel %vm1081, %v1082, %v1080
  %v1084 = vrsqrt.pop %v1074
  %v1085 = vmul.f32 %v1074, %v1084
  %vm1086 = vcmp.eq.f32.partialorder %v1074, inf
  %v1087 = vsel %vm1086, %v1074, %v1085
  %vm1088 = vcmp.eq.f32.partialorder %v1074, 0.0
  %v1089 = vand.u32 %v1074, 2147483648
  %v1090 = vsel %vm1088, %v1089, %v1087
  %v1091 = vrsqrt.pop %v1075
  %v1092 = vmul.f32 %v1075, %v1091
  %vm1093 = vcmp.eq.f32.partialorder %v1075, inf
  %v1094 = vsel %vm1093, %v1075, %v1092
  %vm1095 = vcmp.eq.f32.partialorder %v1075, 0.0
  %v1096 = vand.u32 %v1075, 2147483648
  %v1097 = vsel %vm1095, %v1096, %v1094
  %v1098 = vrsqrt.pop %v1076
  %v1099 = vmul.f32 %v1076, %v1098
  %vm1100 = vcmp.eq.f32.partialorder %v1076, inf
  %v1101 = vsel %vm1100, %v1076, %v1099
  %vm1102 = vcmp.eq.f32.partialorder %v1076, 0.0
  %v1103 = vand.u32 %v1076, 2147483648
  %v1104 = vsel %vm1102, %v1103, %v1101
  %v1105 = vadd.f32 %v1083, 1e-08
  %v1106 = vadd.f32 %v1090, 1e-08
  %v1107 = vadd.f32 %v1097, 1e-08
  %v1108 = vadd.f32 %v1104, 1e-08
  %v1109 = vrcp.pop %v1105
  %v1110 = vrcp.pop %v1106
  %v1111 = vrcp.pop %v1107
  %v1112 = vrcp.pop %v1108
  %v1113 = vmul.f32 %v1069, %v1109
  %v1114 = vmul.f32 %v1070, %v1110
  %v1115 = vmul.f32 %v1071, %v1111
  %v1116 = vmul.f32 %v1072, %v1112
  %v1117 = vsub.f32 %v768, %v1113
  %v1118 = vsub.f32 %v769, %v1114
  %v1119 = vsub.f32 %v770, %v1115
  %v1120 = vsub.f32 %v771, %v1116
  %v1121 = vmul.f32 %v1064, 0.003690037
  %v1122 = vmul.f32 %v1068, 333.6669
  %v1123 = vrsqrt.pop %v1122
  %v1124 = vmul.f32 %v1122, %v1123
  %vm1125 = vcmp.eq.f32.partialorder %v1122, inf
  %v1126 = vsel %vm1125, %v1122, %v1124
  %vm1127 = vcmp.eq.f32.partialorder %v1122, 0.0
  %v1128 = vand.u32 %v1122, 2147483648
  %v1129 = vsel %vm1127, %v1128, %v1126
  %v1130 = vadd.f32 %v1129, 1e-08
  %v1131 = vrcp.pop %v1130
  %v1132 = vmul.f32 %v1121, %v1131
  %v1133 = vsub.f32 %v784, %v1132
  %v1135 = vlaneseq
  %v1136 = vshrl.u32 %v1135, 7
  %v1137 = vsub.s32 0, %v1136
  %v1138 = vrot.slane %v1133, %v1137
  %1140 = vmatprep.subr.mxu0 0.0
  %1141 = vmatpush1.msra.mxu0 %v1117
  %1142 = vmatprep.subr.mxu0 0.0
  %1143 = vmatpush1.msra.mxu0 %v1118
  %1144 = vmatprep.subr.mxu0 0.0
  %1145 = vmatpush1.msra.mxu0 %v1119
  %1146 = vmatprep.subr.mxu0 0.0
  %1147 = vmatpush1.msra.mxu0 %v1120
  %1148 = vmatprep.subr.mxu0 0.0
  %1149 = vmatpush1.msra.mxu0 0.0
  %1150 = vmatprep.subr.mxu0 0.0
  %1151 = vmatpush1.msra.mxu0 0.0
  %1152 = vmatprep.subr.mxu0 0.0
  %1153 = vmatpush1.msra.mxu0 0.0
  %1154 = vmatprep.subr.mxu0 0.0
  %1155 = vmatpush1.msra.mxu0 0.0
  %1156 = vmatprep.subr.mxu0 0.0
  %1157 = vmatpush1.msra.mxu0 0.0
  %1158 = vmatprep.subr.mxu0 0.0
  %1159 = vmatpush1.msra.mxu0 0.0
  %1160 = vmatprep.subr.mxu0 0.0
  %1161 = vmatpush1.msra.mxu0 0.0
  %1162 = vmatprep.subr.mxu0 0.0
  %1163 = vmatpush1.msra.mxu0 0.0
  %1164 = vmatprep.subr.mxu0 0.0
  %1165 = vmatpush1.msra.mxu0 0.0
  %1166 = vmatprep.subr.mxu0 0.0
  %1167 = vmatpush1.msra.mxu0 0.0
  %1168 = vmatprep.subr.mxu0 0.0
  %1169 = vmatpush1.msra.mxu0 0.0
  %1170 = vmatprep.subr.mxu0 0.0
  %1171 = vmatpush1.msra.mxu0 0.0
  %1172 = vmatprep.subr.mxu0 0.0
  %1173 = vmatpush1.msra.mxu0 0.0
  %1174 = vmatprep.subr.mxu0 0.0
  %1175 = vmatpush1.msra.mxu0 0.0
  %1176 = vmatprep.subr.mxu0 0.0
  %1177 = vmatpush1.msra.mxu0 0.0
  %1178 = vmatprep.subr.mxu0 0.0
  %1179 = vmatpush1.msra.mxu0 0.0
  %1180 = vmatprep.subr.mxu0 0.0
  %1181 = vmatpush1.msra.mxu0 0.0
  %1182 = vmatprep.subr.mxu0 0.0
  %1183 = vmatpush1.msra.mxu0 0.0
  %1184 = vmatprep.subr.mxu0 0.0
  %1185 = vmatpush1.msra.mxu0 0.0
  %1186 = vmatprep.subr.mxu0 0.0
  %1187 = vmatpush1.msra.mxu0 0.0
  %1188 = vmatprep.subr.mxu0 0.0
  %1189 = vmatpush1.msra.mxu0 0.0
  %1190 = vmatprep.subr.mxu0 0.0
  %1191 = vmatpush1.msra.mxu0 0.0
  %1192 = vmatprep.subr.mxu0 0.0
  %1193 = vmatpush1.msra.mxu0 0.0
  %1194 = vmatprep.subr.mxu0 0.0
  %1195 = vmatpush1.msra.mxu0 0.0
  %1196 = vmatprep.subr.mxu0 0.0
  %1197 = vmatpush1.msra.mxu0 0.0
  %1198 = vmatprep.subr.mxu0 0.0
  %1199 = vmatpush1.msra.mxu0 0.0
  %1200 = vmatprep.subr.mxu0 0.0
  %1201 = vmatpush1.msra.mxu0 0.0
  %1202 = vmatprep.subr.mxu0 0.0
  %1203 = vmatpush1.msra.mxu0 0.0
  %1204 = vmatprep.mubr.f32.mxu0 0.0
  %1205 = vmatmul.mubr.f32.gmra.mrb[0].mxu0 %v80
  %v1206 = vpop.f32.mrb[0].mxu0
  %v1207 = vadd.f32 %v1138, %v1206
  %v1208 = vpop.f32.mrb[0].mxu0
  %1209 = vmatprep.mubr.f32.mxu0 0.0
  %1210 = vmatmul.mubr.f32.gmra.mrb[0].mxu0 %v83
  %v1211 = vpop.f32.mrb[0].mxu0
  %v1212 = vadd.f32 %v1138, %v1211
  %v1213 = vpop.f32.mrb[0].mxu0
  %1214 = vmatprep.mubr.f32.mxu0 0.0
  %1215 = vmatmul.mubr.f32.gmra.mrb[0].mxu0 %v86
  %v1216 = vpop.f32.mrb[0].mxu0
  %v1217 = vadd.f32 %v1138, %v1216
  %v1218 = vpop.f32.mrb[0].mxu0
  %1219 = vmatprep.mubr.f32.mxu0 0.0
  %1220 = vmatmul.mubr.f32.gmra.mrb[0].mxu0 %v89
  %v1221 = vpop.f32.mrb[0].mxu0
  %v1222 = vadd.f32 %v1138, %v1221
  %v1223 = vpop.f32.mrb[0].mxu0
  %1224 = vdwg.mxu0
  %v1225 = vadd.f32 %v1207, %v60
  %v1226 = vadd.f32 %v1212, %v61
  %v1227 = vadd.f32 %v1217, %v62
  %v1228 = vadd.f32 %v1222, %v63
  %v1229 = vsel %vm78, %v1225, -inf
  %1230 = vmax.xlane.f32.xlu0 %v1229
  %v1231 = vpop.xlane.xlu0 %1230
  %v1232 = vsel %vm78, %v1226, -inf
  %1233 = vmax.xlane.f32.xlu0 %v1232
  %v1234 = vpop.xlane.xlu0 %1233
  %v1235 = vsel %vm78, %v1227, -inf
  %1236 = vmax.xlane.f32.xlu0 %v1235
  %v1237 = vpop.xlane.xlu0 %1236
  %v1238 = vsel %vm78, %v1228, -inf
  %1239 = vmax.xlane.f32.xlu0 %v1238
  %v1240 = vpop.xlane.xlu0 %1239
  %v1241 = vsub.f32 %v1225, %v1231
  %v1242 = vsub.f32 %v1226, %v1234
  %v1243 = vsub.f32 %v1227, %v1237
  %v1244 = vsub.f32 %v1228, %v1240
  %v1245 = vmul.f32 %v1241, 1.442695
  %v1246 = vpow.pop %v1245
  %v1247 = vmul.f32 %v1242, 1.442695
  %v1248 = vpow.pop %v1247
  %v1249 = vmul.f32 %v1243, 1.442695
  %v1250 = vpow.pop %v1249
  %v1251 = vmul.f32 %v1244, 1.442695
  %v1252 = vpow.pop %v1251
  %v1253 = vsel %vm78, %v1246, 0.0
  %1254 = vadd.xlane.f32.xlu0 %v1253
  %v1255 = vpop.xlane.xlu0 %1254
  %v1256 = vsel %vm78, %v1248, 0.0
  %1257 = vadd.xlane.f32.xlu0 %v1256
  %v1258 = vpop.xlane.xlu0 %1257
  %v1259 = vsel %vm78, %v1250, 0.0
  %1260 = vadd.xlane.f32.xlu0 %v1259
  %v1261 = vpop.xlane.xlu0 %1260
  %v1262 = vsel %vm78, %v1252, 0.0
  %1263 = vadd.xlane.f32.xlu0 %v1262
  %v1264 = vpop.xlane.xlu0 %1263
  %v1265 = vrcp.pop %v1255
  %v1266 = vmul.f32 1.0, %v1265
  %v1267 = vrcp.pop %v1258
  %v1268 = vmul.f32 1.0, %v1267
  %v1269 = vrcp.pop %v1261
  %v1270 = vmul.f32 1.0, %v1269
  %v1271 = vrcp.pop %v1264
  %v1272 = vmul.f32 1.0, %v1271
  %v1273 = vmul.f32 %v1246, %v1266
  %v1274 = vmul.f32 %v1248, %v1268
  %v1275 = vmul.f32 %v1250, %v1270
  %v1276 = vmul.f32 %v1252, %v1272
  %v1277 = vsub.f32 %v1273, %v52
  %v1278 = vsub.f32 %v1274, %v53
  %v1279 = vsub.f32 %v1275, %v54
  %v1280 = vsub.f32 %v1276, %v55
  %v1281 = vmul.f32 %v1277, 0.125
  %v1282 = vmul.f32 %v1278, 0.125
  %v1283 = vmul.f32 %v1279, 0.125
  %v1284 = vmul.f32 %v1280, 0.125
  %1285 = vmatprep.subr.mxu0 0.0
  %1286 = vmatpush1.msra.mxu0 %v1281
  %1287 = vmatprep.subr.mxu0 0.0
  %1288 = vmatpush1.msra.mxu0 %v1282
  %1289 = vmatprep.subr.mxu0 0.0
  %1290 = vmatpush1.msra.mxu0 %v1283
  %1291 = vmatprep.subr.mxu0 0.0
  %1292 = vmatpush1.msra.mxu0 %v1284
  %1293 = vmatprep.subr.mxu0 0.0
  %1294 = vmatpush1.msra.mxu0 0.0
  %1295 = vmatprep.subr.mxu0 0.0
  %1296 = vmatpush1.msra.mxu0 0.0
  %1297 = vmatprep.subr.mxu0 0.0
  %1298 = vmatpush1.msra.mxu0 0.0
  %1299 = vmatprep.subr.mxu0 0.0
  %1300 = vmatpush1.msra.mxu0 0.0
  %1301 = vmatprep.subr.mxu0 0.0
  %1302 = vmatpush1.msra.mxu0 0.0
  %1303 = vmatprep.subr.mxu0 0.0
  %1304 = vmatpush1.msra.mxu0 0.0
  %1305 = vmatprep.subr.mxu0 0.0
  %1306 = vmatpush1.msra.mxu0 0.0
  %1307 = vmatprep.subr.mxu0 0.0
  %1308 = vmatpush1.msra.mxu0 0.0
  %1309 = vmatprep.subr.mxu0 0.0
  %1310 = vmatpush1.msra.mxu0 0.0
  %1311 = vmatprep.subr.mxu0 0.0
  %1312 = vmatpush1.msra.mxu0 0.0
  %1313 = vmatprep.subr.mxu0 0.0
  %1314 = vmatpush1.msra.mxu0 0.0
  %1315 = vmatprep.subr.mxu0 0.0
  %1316 = vmatpush1.msra.mxu0 0.0
  %1317 = vmatprep.subr.mxu0 0.0
  %1318 = vmatpush1.msra.mxu0 0.0
  %1319 = vmatprep.subr.mxu0 0.0
  %1320 = vmatpush1.msra.mxu0 0.0
  %1321 = vmatprep.subr.mxu0 0.0
  %1322 = vmatpush1.msra.mxu0 0.0
  %1323 = vmatprep.subr.mxu0 0.0
  %1324 = vmatpush1.msra.mxu0 0.0
  %1325 = vmatprep.subr.mxu0 0.0
  %1326 = vmatpush1.msra.mxu0 0.0
  %1327 = vmatprep.subr.mxu0 0.0
  %1328 = vmatpush1.msra.mxu0 0.0
  %1329 = vmatprep.subr.mxu0 0.0
  %1330 = vmatpush1.msra.mxu0 0.0
  %1331 = vmatprep.subr.mxu0 0.0
  %1332 = vmatpush1.msra.mxu0 0.0
  %1333 = vmatprep.subr.mxu0 0.0
  %1334 = vmatpush1.msra.mxu0 0.0
  %1335 = vmatprep.subr.mxu0 0.0
  %1336 = vmatpush1.msra.mxu0 0.0
  %1337 = vmatprep.subr.mxu0 0.0
  %1338 = vmatpush1.msra.mxu0 0.0
  %1339 = vmatprep.subr.mxu0 0.0
  %1340 = vmatpush1.msra.mxu0 0.0
  %1341 = vmatprep.subr.mxu0 0.0
  %1342 = vmatpush1.msra.mxu0 0.0
  %1343 = vmatprep.subr.mxu0 0.0
  %1344 = vmatpush1.msra.mxu0 0.0
  %1345 = vmatprep.subr.mxu0 0.0
  %1346 = vmatpush1.msra.mxu0 0.0
  %1347 = vmatprep.subr.mxu0 0.0
  %1348 = vmatpush1.msra.mxu0 0.0
  %1349 = vmatprep.mubr.f32.mxu0 0.0
  %1350 = vmatmul.mubr.f32.gmra.mrb[0].mxu0 %v237
  %v1351 = vpop.f32.mrb[0].mxu0
  %v1352 = vadd.f32 0.0, %v1351
  %v1353 = vpop.f32.mrb[0].mxu0
  %1354 = vmatprep.mubr.f32.mxu0 0.0
  %1355 = vmatmul.mubr.f32.gmra.mrb[0].mxu0 %v240
  %v1356 = vpop.f32.mrb[0].mxu0
  %v1357 = vadd.f32 0.0, %v1356
  %v1358 = vpop.f32.mrb[0].mxu0
  %1359 = vmatprep.mubr.f32.mxu0 0.0
  %1360 = vmatmul.mubr.f32.gmra.mrb[0].mxu0 %v243
  %v1361 = vpop.f32.mrb[0].mxu0
  %v1362 = vadd.f32 0.0, %v1361
  %v1363 = vpop.f32.mrb[0].mxu0
  %1364 = vmatprep.mubr.f32.mxu0 0.0
  %1365 = vmatmul.mubr.f32.gmra.mrb[0].mxu0 %v246
  %v1366 = vpop.f32.mrb[0].mxu0
  %v1367 = vadd.f32 0.0, %v1366
  %v1368 = vpop.f32.mrb[0].mxu0
  %1369 = vdwg.mxu0
  %v1370 = vsel %vm78, %v1281, 0.0
  %v1371 = vsel %vm78, %v1282, 0.0
  %v1372 = vadd.f32 %v1370, %v1371
  %v1373 = vsel %vm78, %v1283, 0.0
  %v1374 = vadd.f32 %v1372, %v1373
  %v1375 = vsel %vm78, %v1284, 0.0
  %v1376 = vadd.f32 %v1374, %v1375
  %v1377 = vrot.slane %v1376, 4
  %v1378 = vadd.f32 %v1376, %v1377
  %v1379 = vrot.slane %v1378, 2
  %v1380 = vadd.f32 %v1378, %v1379
  %v1381 = vrot.slane %v1380, 1
  %v1382 = vadd.f32 %v1380, %v1381
  %v1383 = vmul.f32 %v1042, 0.9
  %v1384 = vmul.f32 %v1043, 0.9
  %v1385 = vmul.f32 %v1044, 0.9
  %v1386 = vmul.f32 %v1045, 0.9
  %v1387 = vmul.f32 %v1352, 0.1
  %v1388 = vmul.f32 %v1357, 0.1
  %v1389 = vmul.f32 %v1362, 0.1
  %v1390 = vmul.f32 %v1367, 0.1
  %v1391 = vadd.f32 %v1383, %v1387
  %v1392 = vadd.f32 %v1384, %v1388
  %v1393 = vadd.f32 %v1385, %v1389
  %v1394 = vadd.f32 %v1386, %v1390
  %v1395 = vmul.f32 %v1058, 0.999
  %v1396 = vmul.f32 %v1059, 0.999
  %v1397 = vmul.f32 %v1060, 0.999
  %v1398 = vmul.f32 %v1061, 0.999
  %v1399 = vmul.f32 %v1352, %v1352
  %v1400 = vmul.f32 %v1357, %v1357
  %v1401 = vmul.f32 %v1362, %v1362
  %v1402 = vmul.f32 %v1367, %v1367
  %v1403 = vmul.f32 %v1399, 0.001
  %v1404 = vmul.f32 %v1400, 0.001
  %v1405 = vmul.f32 %v1401, 0.001
  %v1406 = vmul.f32 %v1402, 0.001
  %v1407 = vadd.f32 %v1395, %v1403
  %v1408 = vadd.f32 %v1396, %v1404
  %v1409 = vadd.f32 %v1397, %v1405
  %v1410 = vadd.f32 %v1398, %v1406
  %v1411 = vmul.f32 %v1064, 0.9
  %v1412 = vmul.f32 %v1382, 0.1
  %v1413 = vadd.f32 %v1411, %v1412
  %v1414 = vmul.f32 %v1068, 0.999
  %v1415 = vmul.f32 %v1382, %v1382
  %v1416 = vmul.f32 %v1415, 0.001
  %v1417 = vadd.f32 %v1414, %v1416
  %v1418 = vmul.f32 %v1391, 0.0029078221
  %v1419 = vmul.f32 %v1392, 0.0029078221
  %v1420 = vmul.f32 %v1393, 0.0029078221
  %v1421 = vmul.f32 %v1394, 0.0029078221
  %v1422 = vmul.f32 %v1407, 250.3753
  %v1423 = vmul.f32 %v1408, 250.3753
  %v1424 = vmul.f32 %v1409, 250.3753
  %v1425 = vmul.f32 %v1410, 250.3753
  %v1426 = vrsqrt.pop %v1422
  %v1427 = vmul.f32 %v1422, %v1426
  %vm1428 = vcmp.eq.f32.partialorder %v1422, inf
  %v1429 = vsel %vm1428, %v1422, %v1427
  %vm1430 = vcmp.eq.f32.partialorder %v1422, 0.0
  %v1431 = vand.u32 %v1422, 2147483648
  %v1432 = vsel %vm1430, %v1431, %v1429
  %v1433 = vrsqrt.pop %v1423
  %v1434 = vmul.f32 %v1423, %v1433
  %vm1435 = vcmp.eq.f32.partialorder %v1423, inf
  %v1436 = vsel %vm1435, %v1423, %v1434
  %vm1437 = vcmp.eq.f32.partialorder %v1423, 0.0
  %v1438 = vand.u32 %v1423, 2147483648
  %v1439 = vsel %vm1437, %v1438, %v1436
  %v1440 = vrsqrt.pop %v1424
  %v1441 = vmul.f32 %v1424, %v1440
  %vm1442 = vcmp.eq.f32.partialorder %v1424, inf
  %v1443 = vsel %vm1442, %v1424, %v1441
  %vm1444 = vcmp.eq.f32.partialorder %v1424, 0.0
  %v1445 = vand.u32 %v1424, 2147483648
  %v1446 = vsel %vm1444, %v1445, %v1443
  %v1447 = vrsqrt.pop %v1425
  %v1448 = vmul.f32 %v1425, %v1447
  %vm1449 = vcmp.eq.f32.partialorder %v1425, inf
  %v1450 = vsel %vm1449, %v1425, %v1448
  %vm1451 = vcmp.eq.f32.partialorder %v1425, 0.0
  %v1452 = vand.u32 %v1425, 2147483648
  %v1453 = vsel %vm1451, %v1452, %v1450
  %v1454 = vadd.f32 %v1432, 1e-08
  %v1455 = vadd.f32 %v1439, 1e-08
  %v1456 = vadd.f32 %v1446, 1e-08
  %v1457 = vadd.f32 %v1453, 1e-08
  %v1458 = vrcp.pop %v1454
  %v1459 = vrcp.pop %v1455
  %v1460 = vrcp.pop %v1456
  %v1461 = vrcp.pop %v1457
  %v1462 = vmul.f32 %v1418, %v1458
  %v1463 = vmul.f32 %v1419, %v1459
  %v1464 = vmul.f32 %v1420, %v1460
  %v1465 = vmul.f32 %v1421, %v1461
  %v1466 = vsub.f32 %v1117, %v1462
  %v1467 = vsub.f32 %v1118, %v1463
  %v1468 = vsub.f32 %v1119, %v1464
  %v1469 = vsub.f32 %v1120, %v1465
  %v1470 = vmul.f32 %v1413, 0.0029078221
  %v1471 = vmul.f32 %v1417, 250.3753
  %v1472 = vrsqrt.pop %v1471
  %v1473 = vmul.f32 %v1471, %v1472
  %vm1474 = vcmp.eq.f32.partialorder %v1471, inf
  %v1475 = vsel %vm1474, %v1471, %v1473
  %vm1476 = vcmp.eq.f32.partialorder %v1471, 0.0
  %v1477 = vand.u32 %v1471, 2147483648
  %v1478 = vsel %vm1476, %v1477, %v1475
  %v1479 = vadd.f32 %v1478, 1e-08
  %v1480 = vrcp.pop %v1479
  %v1481 = vmul.f32 %v1470, %v1480
  %v1482 = vsub.f32 %v1133, %v1481
  %v1484 = vlaneseq
  %v1485 = vshrl.u32 %v1484, 7
  %v1486 = vsub.s32 0, %v1485
  %v1487 = vrot.slane %v1482, %v1486
  %1489 = vmatprep.subr.mxu0 0.0
  %1490 = vmatpush1.msra.mxu0 %v1466
  %1491 = vmatprep.subr.mxu0 0.0
  %1492 = vmatpush1.msra.mxu0 %v1467
  %1493 = vmatprep.subr.mxu0 0.0
  %1494 = vmatpush1.msra.mxu0 %v1468
  %1495 = vmatprep.subr.mxu0 0.0
  %1496 = vmatpush1.msra.mxu0 %v1469
  %1497 = vmatprep.subr.mxu0 0.0
  %1498 = vmatpush1.msra.mxu0 0.0
  %1499 = vmatprep.subr.mxu0 0.0
  %1500 = vmatpush1.msra.mxu0 0.0
  %1501 = vmatprep.subr.mxu0 0.0
  %1502 = vmatpush1.msra.mxu0 0.0
  %1503 = vmatprep.subr.mxu0 0.0
  %1504 = vmatpush1.msra.mxu0 0.0
  %1505 = vmatprep.subr.mxu0 0.0
  %1506 = vmatpush1.msra.mxu0 0.0
  %1507 = vmatprep.subr.mxu0 0.0
  %1508 = vmatpush1.msra.mxu0 0.0
  %1509 = vmatprep.subr.mxu0 0.0
  %1510 = vmatpush1.msra.mxu0 0.0
  %1511 = vmatprep.subr.mxu0 0.0
  %1512 = vmatpush1.msra.mxu0 0.0
  %1513 = vmatprep.subr.mxu0 0.0
  %1514 = vmatpush1.msra.mxu0 0.0
  %1515 = vmatprep.subr.mxu0 0.0
  %1516 = vmatpush1.msra.mxu0 0.0
  %1517 = vmatprep.subr.mxu0 0.0
  %1518 = vmatpush1.msra.mxu0 0.0
  %1519 = vmatprep.subr.mxu0 0.0
  %1520 = vmatpush1.msra.mxu0 0.0
  %1521 = vmatprep.subr.mxu0 0.0
  %1522 = vmatpush1.msra.mxu0 0.0
  %1523 = vmatprep.subr.mxu0 0.0
  %1524 = vmatpush1.msra.mxu0 0.0
  %1525 = vmatprep.subr.mxu0 0.0
  %1526 = vmatpush1.msra.mxu0 0.0
  %1527 = vmatprep.subr.mxu0 0.0
  %1528 = vmatpush1.msra.mxu0 0.0
  %1529 = vmatprep.subr.mxu0 0.0
  %1530 = vmatpush1.msra.mxu0 0.0
  %1531 = vmatprep.subr.mxu0 0.0
  %1532 = vmatpush1.msra.mxu0 0.0
  %1533 = vmatprep.subr.mxu0 0.0
  %1534 = vmatpush1.msra.mxu0 0.0
  %1535 = vmatprep.subr.mxu0 0.0
  %1536 = vmatpush1.msra.mxu0 0.0
  %1537 = vmatprep.subr.mxu0 0.0
  %1538 = vmatpush1.msra.mxu0 0.0
  %1539 = vmatprep.subr.mxu0 0.0
  %1540 = vmatpush1.msra.mxu0 0.0
  %1541 = vmatprep.subr.mxu0 0.0
  %1542 = vmatpush1.msra.mxu0 0.0
  %1543 = vmatprep.subr.mxu0 0.0
  %1544 = vmatpush1.msra.mxu0 0.0
  %1545 = vmatprep.subr.mxu0 0.0
  %1546 = vmatpush1.msra.mxu0 0.0
  %1547 = vmatprep.subr.mxu0 0.0
  %1548 = vmatpush1.msra.mxu0 0.0
  %1549 = vmatprep.subr.mxu0 0.0
  %1550 = vmatpush1.msra.mxu0 0.0
  %1551 = vmatprep.subr.mxu0 0.0
  %1552 = vmatpush1.msra.mxu0 0.0
  %1553 = vmatprep.mubr.f32.mxu0 0.0
  %1554 = vmatmul.mubr.f32.gmra.mrb[0].mxu0 %v80
  %v1555 = vpop.f32.mrb[0].mxu0
  %v1556 = vadd.f32 %v1487, %v1555
  %v1557 = vpop.f32.mrb[0].mxu0
  %1558 = vmatprep.mubr.f32.mxu0 0.0
  %1559 = vmatmul.mubr.f32.gmra.mrb[0].mxu0 %v83
  %v1560 = vpop.f32.mrb[0].mxu0
  %v1561 = vadd.f32 %v1487, %v1560
  %v1562 = vpop.f32.mrb[0].mxu0
  %1563 = vmatprep.mubr.f32.mxu0 0.0
  %1564 = vmatmul.mubr.f32.gmra.mrb[0].mxu0 %v86
  %v1565 = vpop.f32.mrb[0].mxu0
  %v1566 = vadd.f32 %v1487, %v1565
  %v1567 = vpop.f32.mrb[0].mxu0
  %1568 = vmatprep.mubr.f32.mxu0 0.0
  %1569 = vmatmul.mubr.f32.gmra.mrb[0].mxu0 %v89
  %v1570 = vpop.f32.mrb[0].mxu0
  %v1571 = vadd.f32 %v1487, %v1570
  %v1572 = vpop.f32.mrb[0].mxu0
  %1573 = vdwg.mxu0
  %v1574 = vadd.f32 %v1556, %v60
  %v1575 = vadd.f32 %v1561, %v61
  %v1576 = vadd.f32 %v1566, %v62
  %v1577 = vadd.f32 %v1571, %v63
  %v1578 = vsel %vm78, %v1574, -inf
  %1579 = vmax.xlane.f32.xlu0 %v1578
  %v1580 = vpop.xlane.xlu0 %1579
  %v1581 = vsel %vm78, %v1575, -inf
  %1582 = vmax.xlane.f32.xlu0 %v1581
  %v1583 = vpop.xlane.xlu0 %1582
  %v1584 = vsel %vm78, %v1576, -inf
  %1585 = vmax.xlane.f32.xlu0 %v1584
  %v1586 = vpop.xlane.xlu0 %1585
  %v1587 = vsel %vm78, %v1577, -inf
  %1588 = vmax.xlane.f32.xlu0 %v1587
  %v1589 = vpop.xlane.xlu0 %1588
  %v1590 = vsub.f32 %v1574, %v1580
  %v1591 = vsub.f32 %v1575, %v1583
  %v1592 = vsub.f32 %v1576, %v1586
  %v1593 = vsub.f32 %v1577, %v1589
  %v1594 = vmul.f32 %v1590, 1.442695
  %v1595 = vpow.pop %v1594
  %v1596 = vmul.f32 %v1591, 1.442695
  %v1597 = vpow.pop %v1596
  %v1598 = vmul.f32 %v1592, 1.442695
  %v1599 = vpow.pop %v1598
  %v1600 = vmul.f32 %v1593, 1.442695
  %v1601 = vpow.pop %v1600
  %v1602 = vsel %vm78, %v1595, 0.0
  %1603 = vadd.xlane.f32.xlu0 %v1602
  %v1604 = vpop.xlane.xlu0 %1603
  %v1605 = vsel %vm78, %v1597, 0.0
  %1606 = vadd.xlane.f32.xlu0 %v1605
  %v1607 = vpop.xlane.xlu0 %1606
  %v1608 = vsel %vm78, %v1599, 0.0
  %1609 = vadd.xlane.f32.xlu0 %v1608
  %v1610 = vpop.xlane.xlu0 %1609
  %v1611 = vsel %vm78, %v1601, 0.0
  %1612 = vadd.xlane.f32.xlu0 %v1611
  %v1613 = vpop.xlane.xlu0 %1612
  %v1614 = vrcp.pop %v1604
  %v1615 = vmul.f32 1.0, %v1614
  %v1616 = vrcp.pop %v1607
  %v1617 = vmul.f32 1.0, %v1616
  %v1618 = vrcp.pop %v1610
  %v1619 = vmul.f32 1.0, %v1618
  %v1620 = vrcp.pop %v1613
  %v1621 = vmul.f32 1.0, %v1620
  %v1622 = vmul.f32 %v1595, %v1615
  %v1623 = vmul.f32 %v1597, %v1617
  %v1624 = vmul.f32 %v1599, %v1619
  %v1625 = vmul.f32 %v1601, %v1621
  %v1626 = vsub.f32 %v1622, %v52
  %v1627 = vsub.f32 %v1623, %v53
  %v1628 = vsub.f32 %v1624, %v54
  %v1629 = vsub.f32 %v1625, %v55
  %v1630 = vmul.f32 %v1626, 0.125
  %v1631 = vmul.f32 %v1627, 0.125
  %v1632 = vmul.f32 %v1628, 0.125
  %v1633 = vmul.f32 %v1629, 0.125
  %1634 = vmatprep.subr.mxu0 0.0
  %1635 = vmatpush1.msra.mxu0 %v1630
  %1636 = vmatprep.subr.mxu0 0.0
  %1637 = vmatpush1.msra.mxu0 %v1631
  %1638 = vmatprep.subr.mxu0 0.0
  %1639 = vmatpush1.msra.mxu0 %v1632
  %1640 = vmatprep.subr.mxu0 0.0
  %1641 = vmatpush1.msra.mxu0 %v1633
  %1642 = vmatprep.subr.mxu0 0.0
  %1643 = vmatpush1.msra.mxu0 0.0
  %1644 = vmatprep.subr.mxu0 0.0
  %1645 = vmatpush1.msra.mxu0 0.0
  %1646 = vmatprep.subr.mxu0 0.0
  %1647 = vmatpush1.msra.mxu0 0.0
  %1648 = vmatprep.subr.mxu0 0.0
  %1649 = vmatpush1.msra.mxu0 0.0
  %1650 = vmatprep.subr.mxu0 0.0
  %1651 = vmatpush1.msra.mxu0 0.0
  %1652 = vmatprep.subr.mxu0 0.0
  %1653 = vmatpush1.msra.mxu0 0.0
  %1654 = vmatprep.subr.mxu0 0.0
  %1655 = vmatpush1.msra.mxu0 0.0
  %1656 = vmatprep.subr.mxu0 0.0
  %1657 = vmatpush1.msra.mxu0 0.0
  %1658 = vmatprep.subr.mxu0 0.0
  %1659 = vmatpush1.msra.mxu0 0.0
  %1660 = vmatprep.subr.mxu0 0.0
  %1661 = vmatpush1.msra.mxu0 0.0
  %1662 = vmatprep.subr.mxu0 0.0
  %1663 = vmatpush1.msra.mxu0 0.0
  %1664 = vmatprep.subr.mxu0 0.0
  %1665 = vmatpush1.msra.mxu0 0.0
  %1666 = vmatprep.subr.mxu0 0.0
  %1667 = vmatpush1.msra.mxu0 0.0
  %1668 = vmatprep.subr.mxu0 0.0
  %1669 = vmatpush1.msra.mxu0 0.0
  %1670 = vmatprep.subr.mxu0 0.0
  %1671 = vmatpush1.msra.mxu0 0.0
  %1672 = vmatprep.subr.mxu0 0.0
  %1673 = vmatpush1.msra.mxu0 0.0
  %1674 = vmatprep.subr.mxu0 0.0
  %1675 = vmatpush1.msra.mxu0 0.0
  %1676 = vmatprep.subr.mxu0 0.0
  %1677 = vmatpush1.msra.mxu0 0.0
  %1678 = vmatprep.subr.mxu0 0.0
  %1679 = vmatpush1.msra.mxu0 0.0
  %1680 = vmatprep.subr.mxu0 0.0
  %1681 = vmatpush1.msra.mxu0 0.0
  %1682 = vmatprep.subr.mxu0 0.0
  %1683 = vmatpush1.msra.mxu0 0.0
  %1684 = vmatprep.subr.mxu0 0.0
  %1685 = vmatpush1.msra.mxu0 0.0
  %1686 = vmatprep.subr.mxu0 0.0
  %1687 = vmatpush1.msra.mxu0 0.0
  %1688 = vmatprep.subr.mxu0 0.0
  %1689 = vmatpush1.msra.mxu0 0.0
  %1690 = vmatprep.subr.mxu0 0.0
  %1691 = vmatpush1.msra.mxu0 0.0
  %1692 = vmatprep.subr.mxu0 0.0
  %1693 = vmatpush1.msra.mxu0 0.0
  %1694 = vmatprep.subr.mxu0 0.0
  %1695 = vmatpush1.msra.mxu0 0.0
  %1696 = vmatprep.subr.mxu0 0.0
  %1697 = vmatpush1.msra.mxu0 0.0
  %1698 = vmatprep.mubr.f32.mxu0 0.0
  %1699 = vmatmul.mubr.f32.gmra.mrb[0].mxu0 %v237
  %v1700 = vpop.f32.mrb[0].mxu0
  %v1701 = vadd.f32 0.0, %v1700
  %v1702 = vpop.f32.mrb[0].mxu0
  %1703 = vmatprep.mubr.f32.mxu0 0.0
  %1704 = vmatmul.mubr.f32.gmra.mrb[0].mxu0 %v240
  %v1705 = vpop.f32.mrb[0].mxu0
  %v1706 = vadd.f32 0.0, %v1705
  %v1707 = vpop.f32.mrb[0].mxu0
  %1708 = vmatprep.mubr.f32.mxu0 0.0
  %1709 = vmatmul.mubr.f32.gmra.mrb[0].mxu0 %v243
  %v1710 = vpop.f32.mrb[0].mxu0
  %v1711 = vadd.f32 0.0, %v1710
  %v1712 = vpop.f32.mrb[0].mxu0
  %1713 = vmatprep.mubr.f32.mxu0 0.0
  %1714 = vmatmul.mubr.f32.gmra.mrb[0].mxu0 %v246
  %v1715 = vpop.f32.mrb[0].mxu0
  %v1716 = vadd.f32 0.0, %v1715
  %v1717 = vpop.f32.mrb[0].mxu0
  %1718 = vdwg.mxu0
  %v1719 = vsel %vm78, %v1630, 0.0
  %v1720 = vsel %vm78, %v1631, 0.0
  %v1721 = vadd.f32 %v1719, %v1720
  %v1722 = vsel %vm78, %v1632, 0.0
  %v1723 = vadd.f32 %v1721, %v1722
  %v1724 = vsel %vm78, %v1633, 0.0
  %v1725 = vadd.f32 %v1723, %v1724
  %v1726 = vrot.slane %v1725, 4
  %v1727 = vadd.f32 %v1725, %v1726
  %v1728 = vrot.slane %v1727, 2
  %v1729 = vadd.f32 %v1727, %v1728
  %v1730 = vrot.slane %v1729, 1
  %v1731 = vadd.f32 %v1729, %v1730
  %v1732 = vmul.f32 %v1391, 0.9
  %v1733 = vmul.f32 %v1392, 0.9
  %v1734 = vmul.f32 %v1393, 0.9
  %v1735 = vmul.f32 %v1394, 0.9
  %v1736 = vmul.f32 %v1701, 0.1
  %v1737 = vmul.f32 %v1706, 0.1
  %v1738 = vmul.f32 %v1711, 0.1
  %v1739 = vmul.f32 %v1716, 0.1
  %v1740 = vadd.f32 %v1732, %v1736
  %v1741 = vadd.f32 %v1733, %v1737
  %v1742 = vadd.f32 %v1734, %v1738
  %v1743 = vadd.f32 %v1735, %v1739
  %v1744 = vmul.f32 %v1407, 0.999
  %v1745 = vmul.f32 %v1408, 0.999
  %v1746 = vmul.f32 %v1409, 0.999
  %v1747 = vmul.f32 %v1410, 0.999
  %v1748 = vmul.f32 %v1701, %v1701
  %v1749 = vmul.f32 %v1706, %v1706
  %v1750 = vmul.f32 %v1711, %v1711
  %v1751 = vmul.f32 %v1716, %v1716
  %v1752 = vmul.f32 %v1748, 0.001
  %v1753 = vmul.f32 %v1749, 0.001
  %v1754 = vmul.f32 %v1750, 0.001
  %v1755 = vmul.f32 %v1751, 0.001
  %v1756 = vadd.f32 %v1744, %v1752
  %v1757 = vadd.f32 %v1745, %v1753
  %v1758 = vadd.f32 %v1746, %v1754
  %v1759 = vadd.f32 %v1747, %v1755
  %v1760 = vmul.f32 %v1413, 0.9
  %v1761 = vmul.f32 %v1731, 0.1
  %v1762 = vadd.f32 %v1760, %v1761
  %v1763 = vmul.f32 %v1417, 0.999
  %v1764 = vmul.f32 %v1731, %v1731
  %v1765 = vmul.f32 %v1764, 0.001
  %v1766 = vadd.f32 %v1763, %v1765
  %v1767 = vmul.f32 %v1740, 0.002441943
  %v1768 = vmul.f32 %v1741, 0.002441943
  %v1769 = vmul.f32 %v1742, 0.002441943
  %v1770 = vmul.f32 %v1743, 0.002441943
  %v1771 = vmul.f32 %v1756, 200.4004
  %v1772 = vmul.f32 %v1757, 200.4004
  %v1773 = vmul.f32 %v1758, 200.4004
  %v1774 = vmul.f32 %v1759, 200.4004
  %v1775 = vrsqrt.pop %v1771
  %v1776 = vmul.f32 %v1771, %v1775
  %vm1777 = vcmp.eq.f32.partialorder %v1771, inf
  %v1778 = vsel %vm1777, %v1771, %v1776
  %vm1779 = vcmp.eq.f32.partialorder %v1771, 0.0
  %v1780 = vand.u32 %v1771, 2147483648
  %v1781 = vsel %vm1779, %v1780, %v1778
  %v1782 = vrsqrt.pop %v1772
  %v1783 = vmul.f32 %v1772, %v1782
  %vm1784 = vcmp.eq.f32.partialorder %v1772, inf
  %v1785 = vsel %vm1784, %v1772, %v1783
  %vm1786 = vcmp.eq.f32.partialorder %v1772, 0.0
  %v1787 = vand.u32 %v1772, 2147483648
  %v1788 = vsel %vm1786, %v1787, %v1785
  %v1789 = vrsqrt.pop %v1773
  %v1790 = vmul.f32 %v1773, %v1789
  %vm1791 = vcmp.eq.f32.partialorder %v1773, inf
  %v1792 = vsel %vm1791, %v1773, %v1790
  %vm1793 = vcmp.eq.f32.partialorder %v1773, 0.0
  %v1794 = vand.u32 %v1773, 2147483648
  %v1795 = vsel %vm1793, %v1794, %v1792
  %v1796 = vrsqrt.pop %v1774
  %v1797 = vmul.f32 %v1774, %v1796
  %vm1798 = vcmp.eq.f32.partialorder %v1774, inf
  %v1799 = vsel %vm1798, %v1774, %v1797
  %vm1800 = vcmp.eq.f32.partialorder %v1774, 0.0
  %v1801 = vand.u32 %v1774, 2147483648
  %v1802 = vsel %vm1800, %v1801, %v1799
  %v1803 = vadd.f32 %v1781, 1e-08
  %v1804 = vadd.f32 %v1788, 1e-08
  %v1805 = vadd.f32 %v1795, 1e-08
  %v1806 = vadd.f32 %v1802, 1e-08
  %v1807 = vrcp.pop %v1803
  %v1808 = vrcp.pop %v1804
  %v1809 = vrcp.pop %v1805
  %v1810 = vrcp.pop %v1806
  %v1811 = vmul.f32 %v1767, %v1807
  %v1812 = vmul.f32 %v1768, %v1808
  %v1813 = vmul.f32 %v1769, %v1809
  %v1814 = vmul.f32 %v1770, %v1810
  %v1815 = vsub.f32 %v1466, %v1811
  %v1816 = vsub.f32 %v1467, %v1812
  %v1817 = vsub.f32 %v1468, %v1813
  %v1818 = vsub.f32 %v1469, %v1814
  %v1819 = vmul.f32 %v1762, 0.002441943
  %v1820 = vmul.f32 %v1766, 200.4004
  %v1821 = vrsqrt.pop %v1820
  %v1822 = vmul.f32 %v1820, %v1821
  %vm1823 = vcmp.eq.f32.partialorder %v1820, inf
  %v1824 = vsel %vm1823, %v1820, %v1822
  %vm1825 = vcmp.eq.f32.partialorder %v1820, 0.0
  %v1826 = vand.u32 %v1820, 2147483648
  %v1827 = vsel %vm1825, %v1826, %v1824
  %v1828 = vadd.f32 %v1827, 1e-08
  %v1829 = vrcp.pop %v1828
  %v1830 = vmul.f32 %v1819, %v1829
  %v1831 = vsub.f32 %v1482, %v1830
  %v1833 = vlaneseq
  %v1834 = vshrl.u32 %v1833, 7
  %v1835 = vsub.s32 0, %v1834
  %v1836 = vrot.slane %v1831, %v1835
  %v1839 = vsel %vm78, %v43, 0
  %v1842 = vsel %vm78, %v44, 0
  %v1845 = vsel %vm78, %v45, 0
  %v1848 = vsel %vm78, %v46, 0
  %1850 = vmatprep.subr.mxu0 0.0
  %1851 = vmatpush1.msra.mxu0 %v1815
  %1852 = vmatprep.subr.mxu0 0.0
  %1853 = vmatpush1.msra.mxu0 %v1816
  %1854 = vmatprep.subr.mxu0 0.0
  %1855 = vmatpush1.msra.mxu0 %v1817
  %1856 = vmatprep.subr.mxu0 0.0
  %1857 = vmatpush1.msra.mxu0 %v1818
  %1858 = vmatprep.subr.mxu0 0.0
  %1859 = vmatpush1.msra.mxu0 0.0
  %1860 = vmatprep.subr.mxu0 0.0
  %1861 = vmatpush1.msra.mxu0 0.0
  %1862 = vmatprep.subr.mxu0 0.0
  %1863 = vmatpush1.msra.mxu0 0.0
  %1864 = vmatprep.subr.mxu0 0.0
  %1865 = vmatpush1.msra.mxu0 0.0
  %1866 = vmatprep.subr.mxu0 0.0
  %1867 = vmatpush1.msra.mxu0 0.0
  %1868 = vmatprep.subr.mxu0 0.0
  %1869 = vmatpush1.msra.mxu0 0.0
  %1870 = vmatprep.subr.mxu0 0.0
  %1871 = vmatpush1.msra.mxu0 0.0
  %1872 = vmatprep.subr.mxu0 0.0
  %1873 = vmatpush1.msra.mxu0 0.0
  %1874 = vmatprep.subr.mxu0 0.0
  %1875 = vmatpush1.msra.mxu0 0.0
  %1876 = vmatprep.subr.mxu0 0.0
  %1877 = vmatpush1.msra.mxu0 0.0
  %1878 = vmatprep.subr.mxu0 0.0
  %1879 = vmatpush1.msra.mxu0 0.0
  %1880 = vmatprep.subr.mxu0 0.0
  %1881 = vmatpush1.msra.mxu0 0.0
  %1882 = vmatprep.subr.mxu0 0.0
  %1883 = vmatpush1.msra.mxu0 0.0
  %1884 = vmatprep.subr.mxu0 0.0
  %1885 = vmatpush1.msra.mxu0 0.0
  %1886 = vmatprep.subr.mxu0 0.0
  %1887 = vmatpush1.msra.mxu0 0.0
  %1888 = vmatprep.subr.mxu0 0.0
  %1889 = vmatpush1.msra.mxu0 0.0
  %1890 = vmatprep.subr.mxu0 0.0
  %1891 = vmatpush1.msra.mxu0 0.0
  %1892 = vmatprep.subr.mxu0 0.0
  %1893 = vmatpush1.msra.mxu0 0.0
  %1894 = vmatprep.subr.mxu0 0.0
  %1895 = vmatpush1.msra.mxu0 0.0
  %1896 = vmatprep.subr.mxu0 0.0
  %1897 = vmatpush1.msra.mxu0 0.0
  %1898 = vmatprep.subr.mxu0 0.0
  %1899 = vmatpush1.msra.mxu0 0.0
  %1900 = vmatprep.subr.mxu0 0.0
  %1901 = vmatpush1.msra.mxu0 0.0
  %1902 = vmatprep.subr.mxu0 0.0
  %1903 = vmatpush1.msra.mxu0 0.0
  %1904 = vmatprep.subr.mxu0 0.0
  %1905 = vmatpush1.msra.mxu0 0.0
  %1906 = vmatprep.subr.mxu0 0.0
  %1907 = vmatpush1.msra.mxu0 0.0
  %1908 = vmatprep.subr.mxu0 0.0
  %1909 = vmatpush1.msra.mxu0 0.0
  %1910 = vmatprep.subr.mxu0 0.0
  %1911 = vmatpush1.msra.mxu0 0.0
  %1912 = vmatprep.subr.mxu0 0.0
  %1913 = vmatpush1.msra.mxu0 0.0
  %1914 = vmatprep.mubr.f32.mxu0 0.0
  %1915 = vmatmul.mubr.f32.gmra.mrb[0].mxu0 %v1839
  %v1916 = vpop.f32.mrb[0].mxu0
  %v1917 = vadd.f32 %v1836, %v1916
  %v1918 = vpop.f32.mrb[0].mxu0
  %1919 = vmatprep.mubr.f32.mxu0 0.0
  %1920 = vmatmul.mubr.f32.gmra.mrb[0].mxu0 %v1842
  %v1921 = vpop.f32.mrb[0].mxu0
  %v1922 = vadd.f32 %v1836, %v1921
  %v1923 = vpop.f32.mrb[0].mxu0
  %1924 = vmatprep.mubr.f32.mxu0 0.0
  %1925 = vmatmul.mubr.f32.gmra.mrb[0].mxu0 %v1845
  %v1926 = vpop.f32.mrb[0].mxu0
  %v1927 = vadd.f32 %v1836, %v1926
  %v1928 = vpop.f32.mrb[0].mxu0
  %1929 = vmatprep.mubr.f32.mxu0 0.0
  %1930 = vmatmul.mubr.f32.gmra.mrb[0].mxu0 %v1848
  %v1931 = vpop.f32.mrb[0].mxu0
  %v1932 = vadd.f32 %v1836, %v1931
  %v1933 = vpop.f32.mrb[0].mxu0
  %1934 = vdwg.mxu0
  %v1935 = vadd.f32 %v1917, %v64
  %v1936 = vadd.f32 %v1922, %v65
  %v1937 = vadd.f32 %v1927, %v66
  %v1938 = vadd.f32 %v1932, %v67
  %v1939 = vsel %vm78, %v1935, -inf
  %1940 = vmax.xlane.f32.xlu0 %v1939
  %v1941 = vpop.xlane.xlu0 %1940
  %v1942 = vsel %vm78, %v1936, -inf
  %1943 = vmax.xlane.f32.xlu0 %v1942
  %v1944 = vpop.xlane.xlu0 %1943
  %v1945 = vsel %vm78, %v1937, -inf
  %1946 = vmax.xlane.f32.xlu0 %v1945
  %v1947 = vpop.xlane.xlu0 %1946
  %v1948 = vsel %vm78, %v1938, -inf
  %1949 = vmax.xlane.f32.xlu0 %v1948
  %v1950 = vpop.xlane.xlu0 %1949
  %v1951 = vsub.f32 %v1935, %v1941
  %v1952 = vsub.f32 %v1936, %v1944
  %v1953 = vsub.f32 %v1937, %v1947
  %v1954 = vsub.f32 %v1938, %v1950
  %v1955 = vmul.f32 %v1951, 1.442695
  %v1956 = vpow.pop %v1955
  %v1957 = vmul.f32 %v1952, 1.442695
  %v1958 = vpow.pop %v1957
  %v1959 = vmul.f32 %v1953, 1.442695
  %v1960 = vpow.pop %v1959
  %v1961 = vmul.f32 %v1954, 1.442695
  %v1962 = vpow.pop %v1961
  %v1963 = vsel %vm78, %v1956, 0.0
  %1964 = vadd.xlane.f32.xlu0 %v1963
  %v1965 = vpop.xlane.xlu0 %1964
  %v1966 = vsel %vm78, %v1958, 0.0
  %1967 = vadd.xlane.f32.xlu0 %v1966
  %v1968 = vpop.xlane.xlu0 %1967
  %v1969 = vsel %vm78, %v1960, 0.0
  %1970 = vadd.xlane.f32.xlu0 %v1969
  %v1971 = vpop.xlane.xlu0 %1970
  %v1972 = vsel %vm78, %v1962, 0.0
  %1973 = vadd.xlane.f32.xlu0 %v1972
  %v1974 = vpop.xlane.xlu0 %1973
  %v1975 = vlog2.pop %v1965
  %v1976 = vmul.f32 %v1975, 0.6931472
  %v1977 = vlog2.pop %v1968
  %v1978 = vmul.f32 %v1977, 0.6931472
  %v1979 = vlog2.pop %v1971
  %v1980 = vmul.f32 %v1979, 0.6931472
  %v1981 = vlog2.pop %v1974
  %v1982 = vmul.f32 %v1981, 0.6931472
  %v1983 = vadd.f32 %v1941, %v1976
  %v1984 = vadd.f32 %v1944, %v1978
  %v1985 = vadd.f32 %v1947, %v1980
  %v1986 = vadd.f32 %v1950, %v1982
  %v1987 = vmul.f32 %v1935, %v56
  %v1988 = vmul.f32 %v1936, %v57
  %v1989 = vmul.f32 %v1937, %v58
  %v1990 = vmul.f32 %v1938, %v59
  %v1991 = vsel %vm78, %v1987, 0.0
  %1992 = vadd.xlane.f32.xlu0 %v1991
  %v1993 = vpop.xlane.xlu0 %1992
  %v1994 = vsel %vm78, %v1988, 0.0
  %1995 = vadd.xlane.f32.xlu0 %v1994
  %v1996 = vpop.xlane.xlu0 %1995
  %v1997 = vsel %vm78, %v1989, 0.0
  %1998 = vadd.xlane.f32.xlu0 %v1997
  %v1999 = vpop.xlane.xlu0 %1998
  %v2000 = vsel %vm78, %v1990, 0.0
  %2001 = vadd.xlane.f32.xlu0 %v2000
  %v2002 = vpop.xlane.xlu0 %2001
  %v2003 = vsub.f32 %v1983, %v1993
  %v2004 = vsub.f32 %v1984, %v1996
  %v2005 = vsub.f32 %v1985, %v1999
  %v2006 = vsub.f32 %v1986, %v2002
  %vm2007 = vcmp.ge.f32.partialorder %v1935, %v1941
  %vm2008 = vcmp.ge.f32.partialorder %v1936, %v1944
  %vm2009 = vcmp.ge.f32.partialorder %v1937, %v1947
  %vm2010 = vcmp.ge.f32.partialorder %v1938, %v1950
  %v2011 = vsel %vm2007, 1, 0
  %v2012 = vsel %vm2008, 1, 0
  %v2013 = vsel %vm2009, 1, 0
  %v2014 = vsel %vm2010, 1, 0
  %v2015 = vcvt.s32.f32 %v2011
  %v2016 = vcvt.s32.f32 %v2012
  %v2017 = vcvt.s32.f32 %v2013
  %v2018 = vcvt.s32.f32 %v2014
  %v2019 = vmul.f32 %v56, %v2015
  %v2020 = vmul.f32 %v57, %v2016
  %v2021 = vmul.f32 %v58, %v2017
  %v2022 = vmul.f32 %v59, %v2018
  %v2023 = vsel %vm78, %v2019, 0.0
  %2024 = vadd.xlane.f32.xlu0 %v2023
  %v2025 = vpop.xlane.xlu0 %2024
  %v2026 = vsel %vm78, %v2020, 0.0
  %2027 = vadd.xlane.f32.xlu0 %v2026
  %v2028 = vpop.xlane.xlu0 %2027
  %v2029 = vsel %vm78, %v2021, 0.0
  %2030 = vadd.xlane.f32.xlu0 %v2029
  %v2031 = vpop.xlane.xlu0 %2030
  %v2032 = vsel %vm78, %v2022, 0.0
  %2033 = vadd.xlane.f32.xlu0 %v2032
  %v2034 = vpop.xlane.xlu0 %2033
  %v2035 = vmul.f32 %v2003, %v68
  %v2036 = vmul.f32 %v2004, %v69
  %v2037 = vmul.f32 %v2005, %v70
  %v2038 = vmul.f32 %v2006, %v71
  %vm2039 = vcmask 31744
  %v2040 = vsel %vm2039, %v2035, 0.0
  %v2041 = vsel %vm2039, %v2036, 0.0
  %v2042 = vadd.f32 %v2040, %v2041
  %v2043 = vsel %vm2039, %v2037, 0.0
  %v2044 = vadd.f32 %v2042, %v2043
  %v2045 = vsel %vm2039, %v2038, 0.0
  %v2046 = vadd.f32 %v2044, %v2045
  %v2047 = vrot.slane %v2046, 4
  %v2048 = vadd.f32 %v2046, %v2047
  %v2049 = vrot.slane %v2048, 2
  %v2050 = vadd.f32 %v2048, %v2049
  %v2051 = vrot.slane %v2050, 1
  %v2052 = vadd.f32 %v2050, %v2051
  %v2053 = vmul.f32 %v2052, 0.125
  %v2054 = vmul.f32 %v2025, %v68
  %v2055 = vmul.f32 %v2028, %v69
  %v2056 = vmul.f32 %v2031, %v70
  %v2057 = vmul.f32 %v2034, %v71
  %v2058 = vsel %vm2039, %v2054, 0.0
  %v2059 = vsel %vm2039, %v2055, 0.0
  %v2060 = vadd.f32 %v2058, %v2059
  %v2061 = vsel %vm2039, %v2056, 0.0
  %v2062 = vadd.f32 %v2060, %v2061
  %v2063 = vsel %vm2039, %v2057, 0.0
  %v2064 = vadd.f32 %v2062, %v2063
  %v2065 = vrot.slane %v2064, 4
  %v2066 = vadd.f32 %v2064, %v2065
  %v2067 = vrot.slane %v2066, 2
  %v2068 = vadd.f32 %v2066, %v2067
  %v2069 = vrot.slane %v2068, 1
  %v2070 = vadd.f32 %v2068, %v2069
  %v2071 = vmul.f32 %v2070, 0.125
  %vm2072 = vcmask 1040384
  %v2073 = vsel %vm2072, %v2053, %v2071
  %vm2074 = vcmask 25600
  %2075 = vst.msk [vmem:[%s10] sm:$0x3] %vm2074, %v2073
  // Predicated region
  $region42: #{maml_forward_pallas.1} parent=0 // pred_check
    _
  $region43: #{maml_forward_pallas.1} parent=0 // pred_check_branch
    %2077 = sbr.rel (0) target = $region45
  $region44: #{maml_forward_pallas.1} parent=0 // pred_region
    _
  $region45: #{maml_forward_pallas.1} parent=0 // pred_fallthru
    _
  // Predicated region
  $region46: #{maml_forward_pallas.1} parent=0 // pred_check
    _
  $region47: #{maml_forward_pallas.1} parent=0 // pred_check_branch
    %2079 = sbr.rel (0) target = $region49
  $region48: #{maml_forward_pallas.1} parent=0 // pred_region
    _
  $region49: #{maml_forward_pallas.1} parent=0 // pred_fallthru
    _

</llo_original>
